<compile_context>
chip_gen: v5e
topology: v5e:2x2
jax: 0.10.0
libtpu: 0.0.40
codegen_flags: <defaults>
</compile_context>

<pallas_src>
import numpy as np
import jax
import jax.numpy as jnp
from jax import lax
from jax.experimental import pallas as pl
from jax.experimental.pallas import tpu as pltpu


def _make_kernel(H, W, C, mm_dtype=jnp.float32):
    Hh, Wh = H // 2, W // 2
    Wp = Wh + 1                  # flattened row width: Wh real cols + 1 zero junk col
    Lc = Hh * Wp                 # flattened length of one parity plane / conv output
    base_in = Wp + 1             # zero rows prepended to each flattened input plane
    Pf = base_in + Lc            # total flattened input-plane length
    base_c = Wp + 1              # zero border around the conv-output buffer
    Sc = Lc + 2 * base_c         # conv-output scratch length

    # Conv2d(k=3, s=2, p=1) taps: kh -> (input parity, flat row shift); same table for kw.
    hmap = ((1, -1), (0, 0), (1, 0))
    conv_taps = []
    for kh in range(3):
        for kw in range(3):
            pa, dr = hmap[kh]
            pc, dc = hmap[kw]
            conv_taps.append((2 * pa + pc, base_in + dr * Wp + dc))

    # ConvTranspose2d(k=4, s=2, p=1): the 3x3 neighbourhood (dr, dc in {-1,0,1}) of the
    # conv output covers the taps of all 4 output parities; t = (dr+1)*3 + (dc+1).
    dec_offs = [base_c + dr * Wp + dc for dr in (-1, 0, 1) for dc in (-1, 0, 1)]

    inv_hw = 1.0 / float(H * W)
    f32 = jnp.float32

    def kernel(xin_ref, wc_ref, wbig_ref, w1t_ref, w2t_ref, mavg_ref, g_ref, b_ref,
               out_ref, col, cbuf, skipbuf):
        # Zero borders of the conv-output buffer (tiny; rewritten every step so the
        # kernel is safe under megacore sharding of the batch axis).
        cbuf[pl.ds(0, base_c), :] = jnp.zeros((base_c, C), mm_dtype)
        cbuf[pl.ds(base_c + Lc, base_c), :] = jnp.zeros((base_c, C), mm_dtype)

        # ---- channel attention ----------------------------------------------------
        # AdaptiveAvgPool2d(1): padding rows / junk cols are zero, so a plain sum works.
        pooled = jnp.zeros((1, C), f32)
        for k in range(4):
            pooled = pooled + jnp.sum(xin_ref[k].astype(f32), axis=0, keepdims=True)
        pooled = pooled * inv_hw                                               # (1, C)
        # Linear -> ReLU -> Linear -> Sigmoid (tiny; VPU reduce + one small dot).
        h = jnp.maximum(
            jnp.sum(w1t_ref[...].astype(f32) * pooled, axis=1, keepdims=True), 0.0)   # (hid, 1)
        scale_col = jax.nn.sigmoid(
            jnp.dot(w2t_ref[...].astype(f32), h, preferred_element_type=f32))          # (C, 1)

        # ---- fold the channel scale into the conv weight (in-register, no scratch) --
        wf = (wc_ref[...].astype(f32) * scale_col[None]).reshape(9 * C, C).astype(mm_dtype)

        # ---- fused strided conv: im2col (Lc, 9C) x (9C, C), one MXU matmul ----------
        for t, (k, off) in enumerate(conv_taps):
            col[:, t * C:(t + 1) * C] = xin_ref[k, pl.ds(off, Lc), :].astype(mm_dtype)
        conv = jnp.dot(col[...], wf, preferred_element_type=f32)               # (Lc, C)
        conv = jnp.maximum(conv, 0.0)                                          # ReLU
        # Zero the junk column so it doubles as the deconv's left/right zero padding.
        rows = lax.broadcasted_iota(jnp.int32, (Lc, 1), 0)
        conv = jnp.where(rows % Wp == Wp - 1, 0.0, conv)
        cbuf[pl.ds(base_c, Lc), :] = conv.astype(mm_dtype)

        # ---- fused transposed conv: ALL 4 output parities in one lane-dense matmul --
        for t, off in enumerate(dec_offs):                    # reuse the im2col scratch
            col[:, t * C:(t + 1) * C] = cbuf[pl.ds(off, Lc), :]
        spatial = jnp.dot(col[...], wbig_ref[...].astype(mm_dtype),
                          preferred_element_type=f32)                          # (Lc, 4C)
        spatial = jnp.maximum(spatial, 0.0)                                    # ReLU

        # ---- skip connection, packed into the same (Lc, 4C) parity-column layout ----
        for p in range(4):
            skipbuf[:, p * C:(p + 1) * C] = xin_ref[p, pl.ds(base_in, Lc), :].astype(f32)
        y = skipbuf[...] + spatial

        # ---- LayerNorm over channels, per parity block, via block-diag avg matmul ---
        mu = jnp.dot(y, mavg_ref[...], preferred_element_type=f32)
        yc = y - mu
        var = jnp.dot(yc * yc, mavg_ref[...], preferred_element_type=f32)
        yn = yc * lax.rsqrt(var + 1e-5)
        out_ref[0] = (yn * g_ref[...] + b_ref[...]).astype(out_ref.dtype)

    dims = dict(Hh=Hh, Wh=Wh, Wp=Wp, Lc=Lc, base_in=base_in, Pf=Pf, Sc=Sc)
    return kernel, dims


def adapter_forward(x, w1, w2, wc_hwio, wd_hwio, gamma, beta, mm_dtype=jnp.float32):
    """x: (B, H, W, C); wc_hwio: (3,3,C,C); wd_hwio: (4,4,C,C) in (kh, kw, ci, co)."""
    B, H, W, C = x.shape
    assert H % 2 == 0 and W % 2 == 0
    hidden = w1.shape[1]
    kernel, d = _make_kernel(H, W, C, mm_dtype)
    Hh, Wh, Wp, Lc, base_in, Pf, Sc = (d[k] for k in
                                       ("Hh", "Wh", "Wp", "Lc", "base_in", "Pf", "Sc"))

    # ---- HBM glue: parity split + flatten + zero pad (single XLA pass) ----
    xq = jnp.stack([x[:, a::2, c::2, :] for a in (0, 1) for c in (0, 1)], axis=1)  # (B,4,Hh,Wh,C)
    xq = jnp.pad(xq, ((0, 0), (0, 0), (0, 0), (0, 1), (0, 0)))                      # junk col = 0
    xq = xq.reshape(B, 4, Lc, C)
    xin = jnp.pad(xq, ((0, 0), (0, 0), (base_in, 0), (0, 0))).reshape(B * 4, Pf, C)

    # Conv weight, (tap = kh*3+kw, ci, co); scale is folded in-kernel.
    wc9 = wc_hwio.reshape(9, C, C).astype(jnp.float32)

    # Fused deconv weight: rows = (tap t=(dr+1)*3+(dc+1), ci); cols = (parity p=2a+c, co);
    # zero blocks where a tap does not contribute to a parity.
    row_k = ({0: 1, -1: 3}, {1: 0, 0: 2})          # a -> {row shift dr: kh}; same for columns
    zero_blk = jnp.zeros((C, C), jnp.float32)

    def blk(a, c, dr, dc):
        kh = row_k[a].get(dr)
        kw = row_k[c].get(dc)
        if kh is None or kw is None:
            return zero_blk
        return wd_hwio[kh, kw].astype(jnp.float32)

    wbig = jnp.concatenate(
        [jnp.concatenate([blk(a, c, dr, dc) for a in (0, 1) for c in (0, 1)], axis=1)
         for dr in (-1, 0, 1) for dc in (-1, 0, 1)], axis=0)                    # (9C, 4C)

    w1t = w1.T.astype(jnp.float32)                                              # (hidden, C)
    w2t = w2.T.astype(jnp.float32)                                              # (C, hidden)
    # Block-diagonal per-parity channel-averaging matrix for LayerNorm stats.
    mavg = jnp.kron(jnp.eye(4, dtype=jnp.float32),
                    jnp.full((C, C), 1.0 / C, jnp.float32))                     # (4C, 4C)
    g4 = jnp.tile(gamma.reshape(1, C).astype(jnp.float32), (1, 4))              # (1, 4C)
    b4 = jnp.tile(beta.reshape(1, C).astype(jnp.float32), (1, 4))               # (1, 4C)

    out = pl.pallas_call(
        kernel,
        out_shape=jax.ShapeDtypeStruct((B, Lc, 4 * C), jnp.float32),
        grid_spec=pltpu.PrefetchScalarGridSpec(
            num_scalar_prefetch=0,
            grid=(B,),                                                  # one step per batch item
            in_specs=[
                pl.BlockSpec((4, Pf, C), lambda b: (b, 0, 0)),          # 4 parity planes of item b
                pl.BlockSpec((9, C, C), lambda b: (0, 0, 0)),           # conv weight (resident)
                pl.BlockSpec((9 * C, 4 * C), lambda b: (0, 0)),         # fused deconv weight
                pl.BlockSpec((hidden, C), lambda b: (0, 0)),
                pl.BlockSpec((C, hidden), lambda b: (0, 0)),
                pl.BlockSpec((4 * C, 4 * C), lambda b: (0, 0)),         # LN block-avg matrix
                pl.BlockSpec((1, 4 * C), lambda b: (0, 0)),             # gamma (tiled x4)
                pl.BlockSpec((1, 4 * C), lambda b: (0, 0)),             # beta  (tiled x4)
            ],
            out_specs=pl.BlockSpec((1, Lc, 4 * C), lambda b: (b, 0, 0)),
            scratch_shapes=[
                pltpu.VMEM((Lc, 9 * C), mm_dtype),      # shared im2col (conv, then deconv)
                pltpu.VMEM((Sc, C), mm_dtype),          # zero-bordered conv output
                pltpu.VMEM((Lc, 4 * C), jnp.float32),   # packed skip connection
            ],
        ),
        compiler_params=pltpu.CompilerParams(
            dimension_semantics=("parallel",),
            vmem_limit_bytes=48 * 1024 * 1024,          # below v7x physical (64 MiB)
        ),
    )(xin, wc9, wbig, w1t, w2t, mavg, g4, b4)

    # ---- HBM glue: drop junk column, re-interleave parities -> (B, H, W, C) ----
    out = out.reshape(B, Hh, Wp, 2, 2, C)[:, :, :Wh]          # (b, r, q, a, c, ch)
    out = out.transpose(0, 1, 3, 2, 4, 5).reshape(B, H, W, C)  # (b, 2r+a, 2q+c, ch)
    return out


def adapter_ref(x, w1, w2, wc_hwio, wd_hwio, gamma, beta):
    """Pure-JAX reference with identical semantics to the PyTorch module."""
    pooled = jnp.mean(x, axis=(1, 2))                         # AdaptiveAvgPool2d(1)
    h = jax.nn.relu(pooled @ w1)
    scale = jax.nn.sigmoid(h @ w2)
    xc = x * scale[:, None, None, :]
    dn = ('NHWC', 'HWIO', 'NHWC')
    y = lax.conv_general_dilated(xc, wc_hwio, (2, 2), ((1, 1), (1, 1)),
                                 dimension_numbers=dn)
    y = jax.nn.relu(y)
    wd_flip = wd_hwio[::-1, ::-1]        # conv_transpose == dilated conv w/ flipped kernel
    z = lax.conv_general_dilated(y, wd_flip, (1, 1), ((2, 2), (2, 2)),
                                 lhs_dilation=(2, 2), dimension_numbers=dn)
    z = jax.nn.relu(z)
    o = x + z
    mu = jnp.mean(o, axis=-1, keepdims=True)
    var = jnp.mean((o - mu) ** 2, axis=-1, keepdims=True)
    return (o - mu) * lax.rsqrt(var + 1e-5) * gamma + beta


if __name__ == "__main__":
    B, H, W, C = 2, 16, 16, 16          # embed_dim = 16
    hidden = int(C * 0.25)              # = 4

    key = jax.random.PRNGKey(0)
    ks = jax.random.split(key, 6)
    x = jax.random.normal(ks[0], (B, H, W, C), jnp.float32)
    # Linear(embed_dim, hidden).weight.T and Linear(hidden, embed_dim).weight.T (bias=False)
    w1 = jax.random.normal(ks[1], (C, hidden), jnp.float32) * 0.3
    w2 = jax.random.normal(ks[2], (hidden, C), jnp.float32) * 0.3
    # Conv2d / ConvTranspose2d weights in (kh, kw, ci, co) layout (bias=False)
    wc = jax.random.normal(ks[3], (3, 3, C, C), jnp.float32) * 0.15
    wd = jax.random.normal(ks[4], (4, 4, C, C), jnp.float32) * 0.15
    gamma = 1.0 + 0.1 * jax.random.normal(ks[5], (C,), jnp.float32)
    beta = jnp.zeros((C,), jnp.float32)

    out = jax.jit(adapter_forward)(x, w1, w2, wc, wd, gamma, beta)
    out = jax.block_until_ready(out)

    ref = adapter_ref(x, w1, w2, wc, wd, gamma, beta)
    np.testing.assert_allclose(np.asarray(out), np.asarray(ref), rtol=2e-4, atol=2e-4)
    print("KERNEL_OK")
</pallas_src>

<mosaic_0001>
module attributes {stable_mosaic.version = 11 : i64} {
  func.func @kernel(%arg0: i32, %arg1: memref<4x82x16xf32, #tpu.memory_space<vmem>>, %arg2: memref<9x16x16xf32, #tpu.memory_space<vmem>>, %arg3: memref<144x64xf32, #tpu.memory_space<vmem>>, %arg4: memref<4x16xf32, #tpu.memory_space<vmem>>, %arg5: memref<16x4xf32, #tpu.memory_space<vmem>>, %arg6: memref<64x64xf32, #tpu.memory_space<vmem>>, %arg7: memref<1x64xf32, #tpu.memory_space<vmem>>, %arg8: memref<1x64xf32, #tpu.memory_space<vmem>>, %arg9: memref<1x72x64xf32, #tpu.memory_space<vmem>>, %arg10: memref<72x144xf32, #tpu.memory_space<vmem>>, %arg11: memref<92x16xf32, #tpu.memory_space<vmem>>, %arg12: memref<72x64xf32, #tpu.memory_space<vmem>>) attributes {dimension_semantics = [#tpu.dimension_semantics<parallel>], iteration_bounds = array<i64: 2>, scalar_prefetch = 0 : i64, scratch_operands = 3 : i64, tpu.core_type = #tpu.core_type<tc>, window_params = [{transform_indices = @transform_0, window_bounds = array<i64: 4, 82, 16>}, {pipeline_mode = #tpu.pipeline_mode<synchronous>, transform_indices = @transform_1, window_bounds = array<i64: 9, 16, 16>}, {pipeline_mode = #tpu.pipeline_mode<synchronous>, transform_indices = @transform_2, window_bounds = array<i64: 144, 64>}, {pipeline_mode = #tpu.pipeline_mode<synchronous>, transform_indices = @transform_3, window_bounds = array<i64: 4, 16>}, {pipeline_mode = #tpu.pipeline_mode<synchronous>, transform_indices = @transform_4, window_bounds = array<i64: 16, 4>}, {pipeline_mode = #tpu.pipeline_mode<synchronous>, transform_indices = @transform_5, window_bounds = array<i64: 64, 64>}, {pipeline_mode = #tpu.pipeline_mode<synchronous>, transform_indices = @transform_6, window_bounds = array<i64: 1, 64>}, {pipeline_mode = #tpu.pipeline_mode<synchronous>, transform_indices = @transform_7, window_bounds = array<i64: 1, 64>}, {transform_indices = @transform_8, window_bounds = array<i64: 1, 72, 64>}]} {
    %cst = arith.constant 0.000000e+00 : f32
    %0 = vector.broadcast %cst : f32 to vector<10x16xf32>
    %c0 = arith.constant 0 : index
    %c0_0 = arith.constant 0 : index
    %1 = vector.load %arg11[%c0, %c0_0] : memref<92x16xf32, #tpu.memory_space<vmem>>, vector<10x16xf32>
    tpu.vector_store %arg11[%c0, %c0_0], %0 {strides = array<i32>} : memref<92x16xf32, #tpu.memory_space<vmem>>, vector<10x16xf32>,
    %cst_1 = arith.constant 0.000000e+00 : f32
    %2 = vector.broadcast %cst_1 : f32 to vector<10x16xf32>
    %c82 = arith.constant 82 : index
    %c0_2 = arith.constant 0 : index
    %3 = vector.load %arg11[%c82, %c0_2] : memref<92x16xf32, #tpu.memory_space<vmem>>, vector<10x16xf32>
    tpu.vector_store %arg11[%c82, %c0_2], %2 {strides = array<i32>} : memref<92x16xf32, #tpu.memory_space<vmem>>, vector<10x16xf32>,
    %cst_3 = arith.constant 0.000000e+00 : f32
    %4 = vector.broadcast %cst_3 : f32 to vector<1x16xf32>
    %c0_4 = arith.constant 0 : index
    %c0_5 = arith.constant 0 : index
    %c0_6 = arith.constant 0 : index
    %5 = vector.load %arg1[%c0_4, %c0_5, %c0_6] : memref<4x82x16xf32, #tpu.memory_space<vmem>>, vector<1x82x16xf32>
    %6 = vector.shape_cast %5 : vector<1x82x16xf32> to vector<82x16xf32>
    %cst_7 = arith.constant dense<0.000000e+00> : vector<16xf32>
    %7 = vector.multi_reduction <add>, %6, %cst_7 [0] : vector<82x16xf32> to vector<16xf32>
    %8 = vector.shape_cast %7 : vector<16xf32> to vector<1x16xf32>
    %9 = arith.addf %4, %8 : vector<1x16xf32>
    %c1 = arith.constant 1 : index
    %c0_8 = arith.constant 0 : index
    %c0_9 = arith.constant 0 : index
    %10 = vector.load %arg1[%c1, %c0_8, %c0_9] : memref<4x82x16xf32, #tpu.memory_space<vmem>>, vector<1x82x16xf32>
    %11 = vector.shape_cast %10 : vector<1x82x16xf32> to vector<82x16xf32>
    %cst_10 = arith.constant dense<0.000000e+00> : vector<16xf32>
    %12 = vector.multi_reduction <add>, %11, %cst_10 [0] : vector<82x16xf32> to vector<16xf32>
    %13 = vector.shape_cast %12 : vector<16xf32> to vector<1x16xf32>
    %14 = arith.addf %9, %13 : vector<1x16xf32>
    %c2 = arith.constant 2 : index
    %c0_11 = arith.constant 0 : index
    %c0_12 = arith.constant 0 : index
    %15 = vector.load %arg1[%c2, %c0_11, %c0_12] : memref<4x82x16xf32, #tpu.memory_space<vmem>>, vector<1x82x16xf32>
    %16 = vector.shape_cast %15 : vector<1x82x16xf32> to vector<82x16xf32>
    %cst_13 = arith.constant dense<0.000000e+00> : vector<16xf32>
    %17 = vector.multi_reduction <add>, %16, %cst_13 [0] : vector<82x16xf32> to vector<16xf32>
    %18 = vector.shape_cast %17 : vector<16xf32> to vector<1x16xf32>
    %19 = arith.addf %14, %18 : vector<1x16xf32>
    %c3 = arith.constant 3 : index
    %c0_14 = arith.constant 0 : index
    %c0_15 = arith.constant 0 : index
    %20 = vector.load %arg1[%c3, %c0_14, %c0_15] : memref<4x82x16xf32, #tpu.memory_space<vmem>>, vector<1x82x16xf32>
    %21 = vector.shape_cast %20 : vector<1x82x16xf32> to vector<82x16xf32>
    %cst_16 = arith.constant dense<0.000000e+00> : vector<16xf32>
    %22 = vector.multi_reduction <add>, %21, %cst_16 [0] : vector<82x16xf32> to vector<16xf32>
    %23 = vector.shape_cast %22 : vector<16xf32> to vector<1x16xf32>
    %24 = arith.addf %19, %23 : vector<1x16xf32>
    %cst_17 = arith.constant 3.906250e-03 : f32
    %25 = vector.broadcast %cst_17 : f32 to vector<1x16xf32>
    %26 = arith.mulf %24, %25 : vector<1x16xf32>
    %c0_18 = arith.constant 0 : index
    %c0_19 = arith.constant 0 : index
    %27 = vector.load %arg4[%c0_18, %c0_19] : memref<4x16xf32, #tpu.memory_space<vmem>>, vector<4x16xf32>
    %28 = vector.broadcast %26 : vector<1x16xf32> to vector<4x16xf32>
    %29 = arith.mulf %27, %28 : vector<4x16xf32>
    %cst_20 = arith.constant dense<0.000000e+00> : vector<4xf32>
    %30 = vector.multi_reduction <add>, %29, %cst_20 [1] : vector<4x16xf32> to vector<4xf32>
    %31 = vector.shape_cast %30 : vector<4xf32> to vector<4x1xf32>
    %cst_21 = arith.constant 0.000000e+00 : f32
    %32 = vector.broadcast %cst_21 : f32 to vector<4x1xf32>
    %33 = arith.maximumf %31, %32 : vector<4x1xf32>
    %c0_22 = arith.constant 0 : index
    %c0_23 = arith.constant 0 : index
    %34 = vector.load %arg5[%c0_22, %c0_23] : memref<16x4xf32, #tpu.memory_space<vmem>>, vector<16x4xf32>
    %cst_24 = arith.constant dense<0.000000e+00> : vector<16x1xf32>
    %35 = tpu.matmul %34, %33, %cst_24 {dimension_numbers = #tpu.dot_dimension_numbers<[1], [0], [0], [1], [0, 0, 1, 1], [], []>} : vector<16x4xf32>, vector<4x1xf32>, vector<16x1xf32> -> vector<16x1xf32>
    %36 = arith.negf %35 : vector<16x1xf32>
    %37 = math.exp %36 : vector<16x1xf32>
    %cst_25 = arith.constant 1.000000e+00 : f32
    %38 = vector.broadcast %cst_25 : f32 to vector<16x1xf32>
    %39 = arith.addf %38, %37 : vector<16x1xf32>
    %40 = arith.divf %38, %39 : vector<16x1xf32>
    %c0_26 = arith.constant 0 : index
    %c0_27 = arith.constant 0 : index
    %c0_28 = arith.constant 0 : index
    %41 = vector.load %arg2[%c0_26, %c0_27, %c0_28] : memref<9x16x16xf32, #tpu.memory_space<vmem>>, vector<9x16x16xf32>
    %42 = vector.shape_cast %40 : vector<16x1xf32> to vector<1x16x1xf32>
    %43 = vector.broadcast %42 : vector<1x16x1xf32> to vector<9x16x16xf32>
    %44 = arith.mulf %41, %43 : vector<9x16x16xf32>
    %45 = vector.shape_cast %44 : vector<9x16x16xf32> to vector<144x16xf32>
    %c3_29 = arith.constant 3 : index
    %c0_30 = arith.constant 0 : index
    %c0_31 = arith.constant 0 : index
    %46 = vector.load %arg1[%c3_29, %c0_30, %c0_31] : memref<4x82x16xf32, #tpu.memory_space<vmem>>, vector<1x72x16xf32>
    %47 = vector.shape_cast %46 : vector<1x72x16xf32> to vector<72x16xf32>
    %c0_32 = arith.constant 0 : index
    %c0_33 = arith.constant 0 : index
    %48 = vector.load %arg10[%c0_32, %c0_33] : memref<72x144xf32, #tpu.memory_space<vmem>>, vector<72x16xf32>
    tpu.vector_store %arg10[%c0_32, %c0_33], %47 {strides = array<i32>} : memref<72x144xf32, #tpu.memory_space<vmem>>, vector<72x16xf32>,
    %c2_34 = arith.constant 2 : index
    %c1_35 = arith.constant 1 : index
    %c0_36 = arith.constant 0 : index
    %49 = vector.load %arg1[%c2_34, %c1_35, %c0_36] : memref<4x82x16xf32, #tpu.memory_space<vmem>>, vector<1x72x16xf32>
    %50 = vector.shape_cast %49 : vector<1x72x16xf32> to vector<72x16xf32>
    %c0_37 = arith.constant 0 : index
    %c16 = arith.constant 16 : index
    %51 = vector.load %arg10[%c0_37, %c16] : memref<72x144xf32, #tpu.memory_space<vmem>>, vector<72x16xf32>
    tpu.vector_store %arg10[%c0_37, %c16], %50 {strides = array<i32>} : memref<72x144xf32, #tpu.memory_space<vmem>>, vector<72x16xf32>,
    %c3_38 = arith.constant 3 : index
    %c1_39 = arith.constant 1 : index
    %c0_40 = arith.constant 0 : index
    %52 = vector.load %arg1[%c3_38, %c1_39, %c0_40] : memref<4x82x16xf32, #tpu.memory_space<vmem>>, vector<1x72x16xf32>
    %53 = vector.shape_cast %52 : vector<1x72x16xf32> to vector<72x16xf32>
    %c0_41 = arith.constant 0 : index
    %c32 = arith.constant 32 : index
    %54 = vector.load %arg10[%c0_41, %c32] : memref<72x144xf32, #tpu.memory_space<vmem>>, vector<72x16xf32>
    tpu.vector_store %arg10[%c0_41, %c32], %53 {strides = array<i32>} : memref<72x144xf32, #tpu.memory_space<vmem>>, vector<72x16xf32>,
    %c1_42 = arith.constant 1 : index
    %c9 = arith.constant 9 : index
    %c0_43 = arith.constant 0 : index
    %55 = vector.load %arg1[%c1_42, %c9, %c0_43] : memref<4x82x16xf32, #tpu.memory_space<vmem>>, vector<1x72x16xf32>
    %56 = vector.shape_cast %55 : vector<1x72x16xf32> to vector<72x16xf32>
    %c0_44 = arith.constant 0 : index
    %c48 = arith.constant 48 : index
    %57 = vector.load %arg10[%c0_44, %c48] : memref<72x144xf32, #tpu.memory_space<vmem>>, vector<72x16xf32>
    tpu.vector_store %arg10[%c0_44, %c48], %56 {strides = array<i32>} : memref<72x144xf32, #tpu.memory_space<vmem>>, vector<72x16xf32>,
    %c0_45 = arith.constant 0 : index
    %c10 = arith.constant 10 : index
    %c0_46 = arith.constant 0 : index
    %58 = vector.load %arg1[%c0_45, %c10, %c0_46] : memref<4x82x16xf32, #tpu.memory_space<vmem>>, vector<1x72x16xf32>
    %59 = vector.shape_cast %58 : vector<1x72x16xf32> to vector<72x16xf32>
    %c0_47 = arith.constant 0 : index
    %c64 = arith.constant 64 : index
    %60 = vector.load %arg10[%c0_47, %c64] : memref<72x144xf32, #tpu.memory_space<vmem>>, vector<72x16xf32>
    tpu.vector_store %arg10[%c0_47, %c64], %59 {strides = array<i32>} : memref<72x144xf32, #tpu.memory_space<vmem>>, vector<72x16xf32>,
    %c1_48 = arith.constant 1 : index
    %c10_49 = arith.constant 10 : index
    %c0_50 = arith.constant 0 : index
    %61 = vector.load %arg1[%c1_48, %c10_49, %c0_50] : memref<4x82x16xf32, #tpu.memory_space<vmem>>, vector<1x72x16xf32>
    %62 = vector.shape_cast %61 : vector<1x72x16xf32> to vector<72x16xf32>
    %c0_51 = arith.constant 0 : index
    %c80 = arith.constant 80 : index
    %63 = vector.load %arg10[%c0_51, %c80] : memref<72x144xf32, #tpu.memory_space<vmem>>, vector<72x16xf32>
    tpu.vector_store %arg10[%c0_51, %c80], %62 {strides = array<i32>} : memref<72x144xf32, #tpu.memory_space<vmem>>, vector<72x16xf32>,
    %c3_52 = arith.constant 3 : index
    %c9_53 = arith.constant 9 : index
    %c0_54 = arith.constant 0 : index
    %64 = vector.load %arg1[%c3_52, %c9_53, %c0_54] : memref<4x82x16xf32, #tpu.memory_space<vmem>>, vector<1x72x16xf32>
    %65 = vector.shape_cast %64 : vector<1x72x16xf32> to vector<72x16xf32>
    %c0_55 = arith.constant 0 : index
    %c96 = arith.constant 96 : index
    %66 = vector.load %arg10[%c0_55, %c96] : memref<72x144xf32, #tpu.memory_space<vmem>>, vector<72x16xf32>
    tpu.vector_store %arg10[%c0_55, %c96], %65 {strides = array<i32>} : memref<72x144xf32, #tpu.memory_space<vmem>>, vector<72x16xf32>,
    %c2_56 = arith.constant 2 : index
    %c10_57 = arith.constant 10 : index
    %c0_58 = arith.constant 0 : index
    %67 = vector.load %arg1[%c2_56, %c10_57, %c0_58] : memref<4x82x16xf32, #tpu.memory_space<vmem>>, vector<1x72x16xf32>
    %68 = vector.shape_cast %67 : vector<1x72x16xf32> to vector<72x16xf32>
    %c0_59 = arith.constant 0 : index
    %c112 = arith.constant 112 : index
    %69 = vector.load %arg10[%c0_59, %c112] : memref<72x144xf32, #tpu.memory_space<vmem>>, vector<72x16xf32>
    tpu.vector_store %arg10[%c0_59, %c112], %68 {strides = array<i32>} : memref<72x144xf32, #tpu.memory_space<vmem>>, vector<72x16xf32>,
    %c3_60 = arith.constant 3 : index
    %c10_61 = arith.constant 10 : index
    %c0_62 = arith.constant 0 : index
    %70 = vector.load %arg1[%c3_60, %c10_61, %c0_62] : memref<4x82x16xf32, #tpu.memory_space<vmem>>, vector<1x72x16xf32>
    %71 = vector.shape_cast %70 : vector<1x72x16xf32> to vector<72x16xf32>
    %c0_63 = arith.constant 0 : index
    %c128 = arith.constant 128 : index
    %72 = vector.load %arg10[%c0_63, %c128] : memref<72x144xf32, #tpu.memory_space<vmem>>, vector<72x16xf32>
    tpu.vector_store %arg10[%c0_63, %c128], %71 {strides = array<i32>} : memref<72x144xf32, #tpu.memory_space<vmem>>, vector<72x16xf32>,
    %c0_64 = arith.constant 0 : index
    %c0_65 = arith.constant 0 : index
    %73 = vector.load %arg10[%c0_64, %c0_65] : memref<72x144xf32, #tpu.memory_space<vmem>>, vector<72x144xf32>
    %cst_66 = arith.constant dense<0.000000e+00> : vector<72x16xf32>
    %74 = tpu.matmul %73, %45, %cst_66 {dimension_numbers = #tpu.dot_dimension_numbers<[1], [0], [0], [1], [0, 0, 1, 1], [], []>} : vector<72x144xf32>, vector<144x16xf32>, vector<72x16xf32> -> vector<72x16xf32>
    %cst_67 = arith.constant 0.000000e+00 : f32
    %75 = vector.broadcast %cst_67 : f32 to vector<72x16xf32>
    %76 = arith.maximumf %74, %75 : vector<72x16xf32>
    %77 = tpu.iota {dimensions = array<i32: 0>} : vector<72x1xi32>
    %c9_i32 = arith.constant 9 : i32
    %c0_i32 = arith.constant 0 : i32
    %78 = arith.cmpi eq, %c9_i32, %c0_i32 : i32
    %c1_i32 = arith.constant 1 : i32
    %79 = arith.select %78, %c1_i32, %c9_i32 : i32
    %80 = vector.broadcast %79 : i32 to vector<72x1xi32>
    %81 = arith.remsi %77, %80 : vector<72x1xi32>
    %c0_i32_68 = arith.constant 0 : i32
    %82 = vector.broadcast %c0_i32_68 : i32 to vector<72x1xi32>
    %83 = arith.cmpi ne, %81, %82 : vector<72x1xi32>
    %c0_i32_69 = arith.constant 0 : i32
    %84 = vector.broadcast %c0_i32_69 : i32 to vector<72x1xi32>
    %85 = arith.cmpi slt, %81, %84 : vector<72x1xi32>
    %c0_i32_70 = arith.constant 0 : i32
    %86 = arith.cmpi slt, %79, %c0_i32_70 : i32
    %87 = vector.broadcast %86 : i1 to vector<72x1xi1>
    %88 = vector.broadcast %87 : vector<72x1xi1> to vector<72x1xi1>
    %89 = arith.xori %85, %88 : vector<72x1xi1>
    %90 = arith.andi %89, %83 : vector<72x1xi1>
    %91 = vector.broadcast %79 : i32 to vector<72x1xi32>
    %92 = arith.addi %81, %91 : vector<72x1xi32>
    %93 = arith.select %90, %92, %81 : vector<72x1xi1>, vector<72x1xi32>
    %c8_i32 = arith.constant 8 : i32
    %94 = vector.broadcast %c8_i32 : i32 to vector<72x1xi32>
    %95 = arith.cmpi eq, %93, %94 : vector<72x1xi32>
    %cst_71 = arith.constant 0.000000e+00 : f32
    %96 = vector.shape_cast %95 : vector<72x1xi1> to vector<72x1xi1>
    %97 = vector.broadcast %96 : vector<72x1xi1> to vector<72x16xi1>
    %98 = vector.broadcast %cst_71 : f32 to vector<72x16xf32>
    %99 = arith.select %97, %98, %76 : vector<72x16xi1>, vector<72x16xf32>
    %c10_72 = arith.constant 10 : index
    %c0_73 = arith.constant 0 : index
    %100 = vector.load %arg11[%c10_72, %c0_73] : memref<92x16xf32, #tpu.memory_space<vmem>>, vector<72x16xf32>
    tpu.vector_store %arg11[%c10_72, %c0_73], %99 {strides = array<i32>} : memref<92x16xf32, #tpu.memory_space<vmem>>, vector<72x16xf32>,
    %c0_74 = arith.constant 0 : index
    %c0_75 = arith.constant 0 : index
    %101 = vector.load %arg11[%c0_74, %c0_75] : memref<92x16xf32, #tpu.memory_space<vmem>>, vector<72x16xf32>
    %c0_76 = arith.constant 0 : index
    %c0_77 = arith.constant 0 : index
    %102 = vector.load %arg10[%c0_76, %c0_77] : memref<72x144xf32, #tpu.memory_space<vmem>>, vector<72x16xf32>
    tpu.vector_store %arg10[%c0_76, %c0_77], %101 {strides = array<i32>} : memref<72x144xf32, #tpu.memory_space<vmem>>, vector<72x16xf32>,
    %c1_78 = arith.constant 1 : index
    %c0_79 = arith.constant 0 : index
    %103 = vector.load %arg11[%c1_78, %c0_79] : memref<92x16xf32, #tpu.memory_space<vmem>>, vector<72x16xf32>
    %c0_80 = arith.constant 0 : index
    %c16_81 = arith.constant 16 : index
    %104 = vector.load %arg10[%c0_80, %c16_81] : memref<72x144xf32, #tpu.memory_space<vmem>>, vector<72x16xf32>
    tpu.vector_store %arg10[%c0_80, %c16_81], %103 {strides = array<i32>} : memref<72x144xf32, #tpu.memory_space<vmem>>, vector<72x16xf32>,
    %c2_82 = arith.constant 2 : index
    %c0_83 = arith.constant 0 : index
    %105 = vector.load %arg11[%c2_82, %c0_83] : memref<92x16xf32, #tpu.memory_space<vmem>>, vector<72x16xf32>
    %c0_84 = arith.constant 0 : index
    %c32_85 = arith.constant 32 : index
    %106 = vector.load %arg10[%c0_84, %c32_85] : memref<72x144xf32, #tpu.memory_space<vmem>>, vector<72x16xf32>
    tpu.vector_store %arg10[%c0_84, %c32_85], %105 {strides = array<i32>} : memref<72x144xf32, #tpu.memory_space<vmem>>, vector<72x16xf32>,
    %c9_86 = arith.constant 9 : index
    %c0_87 = arith.constant 0 : index
    %107 = vector.load %arg11[%c9_86, %c0_87] : memref<92x16xf32, #tpu.memory_space<vmem>>, vector<72x16xf32>
    %c0_88 = arith.constant 0 : index
    %c48_89 = arith.constant 48 : index
    %108 = vector.load %arg10[%c0_88, %c48_89] : memref<72x144xf32, #tpu.memory_space<vmem>>, vector<72x16xf32>
    tpu.vector_store %arg10[%c0_88, %c48_89], %107 {strides = array<i32>} : memref<72x144xf32, #tpu.memory_space<vmem>>, vector<72x16xf32>,
    %c10_90 = arith.constant 10 : index
    %c0_91 = arith.constant 0 : index
    %109 = vector.load %arg11[%c10_90, %c0_91] : memref<92x16xf32, #tpu.memory_space<vmem>>, vector<72x16xf32>
    %c0_92 = arith.constant 0 : index
    %c64_93 = arith.constant 64 : index
    %110 = vector.load %arg10[%c0_92, %c64_93] : memref<72x144xf32, #tpu.memory_space<vmem>>, vector<72x16xf32>
    tpu.vector_store %arg10[%c0_92, %c64_93], %109 {strides = array<i32>} : memref<72x144xf32, #tpu.memory_space<vmem>>, vector<72x16xf32>,
    %c11 = arith.constant 11 : index
    %c0_94 = arith.constant 0 : index
    %111 = vector.load %arg11[%c11, %c0_94] : memref<92x16xf32, #tpu.memory_space<vmem>>, vector<72x16xf32>
    %c0_95 = arith.constant 0 : index
    %c80_96 = arith.constant 80 : index
    %112 = vector.load %arg10[%c0_95, %c80_96] : memref<72x144xf32, #tpu.memory_space<vmem>>, vector<72x16xf32>
    tpu.vector_store %arg10[%c0_95, %c80_96], %111 {strides = array<i32>} : memref<72x144xf32, #tpu.memory_space<vmem>>, vector<72x16xf32>,
    %c18 = arith.constant 18 : index
    %c0_97 = arith.constant 0 : index
    %113 = vector.load %arg11[%c18, %c0_97] : memref<92x16xf32, #tpu.memory_space<vmem>>, vector<72x16xf32>
    %c0_98 = arith.constant 0 : index
    %c96_99 = arith.constant 96 : index
    %114 = vector.load %arg10[%c0_98, %c96_99] : memref<72x144xf32, #tpu.memory_space<vmem>>, vector<72x16xf32>
    tpu.vector_store %arg10[%c0_98, %c96_99], %113 {strides = array<i32>} : memref<72x144xf32, #tpu.memory_space<vmem>>, vector<72x16xf32>,
    %c19 = arith.constant 19 : index
    %c0_100 = arith.constant 0 : index
    %115 = vector.load %arg11[%c19, %c0_100] : memref<92x16xf32, #tpu.memory_space<vmem>>, vector<72x16xf32>
    %c0_101 = arith.constant 0 : index
    %c112_102 = arith.constant 112 : index
    %116 = vector.load %arg10[%c0_101, %c112_102] : memref<72x144xf32, #tpu.memory_space<vmem>>, vector<72x16xf32>
    tpu.vector_store %arg10[%c0_101, %c112_102], %115 {strides = array<i32>} : memref<72x144xf32, #tpu.memory_space<vmem>>, vector<72x16xf32>,
    %c20 = arith.constant 20 : index
    %c0_103 = arith.constant 0 : index
    %117 = vector.load %arg11[%c20, %c0_103] : memref<92x16xf32, #tpu.memory_space<vmem>>, vector<72x16xf32>
    %c0_104 = arith.constant 0 : index
    %c128_105 = arith.constant 128 : index
    %118 = vector.load %arg10[%c0_104, %c128_105] : memref<72x144xf32, #tpu.memory_space<vmem>>, vector<72x16xf32>
    tpu.vector_store %arg10[%c0_104, %c128_105], %117 {strides = array<i32>} : memref<72x144xf32, #tpu.memory_space<vmem>>, vector<72x16xf32>,
    %c0_106 = arith.constant 0 : index
    %c0_107 = arith.constant 0 : index
    %119 = vector.load %arg10[%c0_106, %c0_107] : memref<72x144xf32, #tpu.memory_space<vmem>>, vector<72x144xf32>
    %c0_108 = arith.constant 0 : index
    %c0_109 = arith.constant 0 : index
    %120 = vector.load %arg3[%c0_108, %c0_109] : memref<144x64xf32, #tpu.memory_space<vmem>>, vector<144x64xf32>
    %cst_110 = arith.constant dense<0.000000e+00> : vector<72x64xf32>
    %121 = tpu.matmul %119, %120, %cst_110 {dimension_numbers = #tpu.dot_dimension_numbers<[1], [0], [0], [1], [0, 0, 1, 1], [], []>} : vector<72x144xf32>, vector<144x64xf32>, vector<72x64xf32> -> vector<72x64xf32>
    %cst_111 = arith.constant 0.000000e+00 : f32
    %122 = vector.broadcast %cst_111 : f32 to vector<72x64xf32>
    %123 = arith.maximumf %121, %122 : vector<72x64xf32>
    %c0_112 = arith.constant 0 : index
    %c10_113 = arith.constant 10 : index
    %c0_114 = arith.constant 0 : index
    %124 = vector.load %arg1[%c0_112, %c10_113, %c0_114] : memref<4x82x16xf32, #tpu.memory_space<vmem>>, vector<1x72x16xf32>
    %125 = vector.shape_cast %124 : vector<1x72x16xf32> to vector<72x16xf32>
    %c0_115 = arith.constant 0 : index
    %c0_116 = arith.constant 0 : index
    %126 = vector.load %arg12[%c0_115, %c0_116] : memref<72x64xf32, #tpu.memory_space<vmem>>, vector<72x16xf32>
    tpu.vector_store %arg12[%c0_115, %c0_116], %125 {strides = array<i32>} : memref<72x64xf32, #tpu.memory_space<vmem>>, vector<72x16xf32>,
    %c1_117 = arith.constant 1 : index
    %c10_118 = arith.constant 10 : index
    %c0_119 = arith.constant 0 : index
    %127 = vector.load %arg1[%c1_117, %c10_118, %c0_119] : memref<4x82x16xf32, #tpu.memory_space<vmem>>, vector<1x72x16xf32>
    %128 = vector.shape_cast %127 : vector<1x72x16xf32> to vector<72x16xf32>
    %c0_120 = arith.constant 0 : index
    %c16_121 = arith.constant 16 : index
    %129 = vector.load %arg12[%c0_120, %c16_121] : memref<72x64xf32, #tpu.memory_space<vmem>>, vector<72x16xf32>
    tpu.vector_store %arg12[%c0_120, %c16_121], %128 {strides = array<i32>} : memref<72x64xf32, #tpu.memory_space<vmem>>, vector<72x16xf32>,
    %c2_122 = arith.constant 2 : index
    %c10_123 = arith.constant 10 : index
    %c0_124 = arith.constant 0 : index
    %130 = vector.load %arg1[%c2_122, %c10_123, %c0_124] : memref<4x82x16xf32, #tpu.memory_space<vmem>>, vector<1x72x16xf32>
    %131 = vector.shape_cast %130 : vector<1x72x16xf32> to vector<72x16xf32>
    %c0_125 = arith.constant 0 : index
    %c32_126 = arith.constant 32 : index
    %132 = vector.load %arg12[%c0_125, %c32_126] : memref<72x64xf32, #tpu.memory_space<vmem>>, vector<72x16xf32>
    tpu.vector_store %arg12[%c0_125, %c32_126], %131 {strides = array<i32>} : memref<72x64xf32, #tpu.memory_space<vmem>>, vector<72x16xf32>,
    %c3_127 = arith.constant 3 : index
    %c10_128 = arith.constant 10 : index
    %c0_129 = arith.constant 0 : index
    %133 = vector.load %arg1[%c3_127, %c10_128, %c0_129] : memref<4x82x16xf32, #tpu.memory_space<vmem>>, vector<1x72x16xf32>
    %134 = vector.shape_cast %133 : vector<1x72x16xf32> to vector<72x16xf32>
    %c0_130 = arith.constant 0 : index
    %c48_131 = arith.constant 48 : index
    %135 = vector.load %arg12[%c0_130, %c48_131] : memref<72x64xf32, #tpu.memory_space<vmem>>, vector<72x16xf32>
    tpu.vector_store %arg12[%c0_130, %c48_131], %134 {strides = array<i32>} : memref<72x64xf32, #tpu.memory_space<vmem>>, vector<72x16xf32>,
    %c0_132 = arith.constant 0 : index
    %c0_133 = arith.constant 0 : index
    %136 = vector.load %arg12[%c0_132, %c0_133] : memref<72x64xf32, #tpu.memory_space<vmem>>, vector<72x64xf32>
    %137 = arith.addf %136, %123 : vector<72x64xf32>
    %c0_134 = arith.constant 0 : index
    %c0_135 = arith.constant 0 : index
    %138 = vector.load %arg6[%c0_134, %c0_135] : memref<64x64xf32, #tpu.memory_space<vmem>>, vector<64x64xf32>
    %cst_136 = arith.constant dense<0.000000e+00> : vector<72x64xf32>
    %139 = tpu.matmul %137, %138, %cst_136 {dimension_numbers = #tpu.dot_dimension_numbers<[1], [0], [0], [1], [0, 0, 1, 1], [], []>} : vector<72x64xf32>, vector<64x64xf32>, vector<72x64xf32> -> vector<72x64xf32>
    %140 = arith.subf %137, %139 : vector<72x64xf32>
    %141 = arith.mulf %140, %140 : vector<72x64xf32>
    %c0_137 = arith.constant 0 : index
    %c0_138 = arith.constant 0 : index
    %142 = vector.load %arg6[%c0_137, %c0_138] : memref<64x64xf32, #tpu.memory_space<vmem>>, vector<64x64xf32>
    %cst_139 = arith.constant dense<0.000000e+00> : vector<72x64xf32>
    %143 = tpu.matmul %141, %142, %cst_139 {dimension_numbers = #tpu.dot_dimension_numbers<[1], [0], [0], [1], [0, 0, 1, 1], [], []>} : vector<72x64xf32>, vector<64x64xf32>, vector<72x64xf32> -> vector<72x64xf32>
    %cst_140 = arith.constant 9.99999974E-6 : f32
    %144 = vector.broadcast %cst_140 : f32 to vector<72x64xf32>
    %145 = arith.addf %143, %144 : vector<72x64xf32>
    %146 = math.rsqrt %145 : vector<72x64xf32>
    %147 = arith.mulf %140, %146 : vector<72x64xf32>
    %c0_141 = arith.constant 0 : index
    %c0_142 = arith.constant 0 : index
    %148 = vector.load %arg7[%c0_141, %c0_142] : memref<1x64xf32, #tpu.memory_space<vmem>>, vector<1x64xf32>
    %149 = vector.broadcast %148 : vector<1x64xf32> to vector<72x64xf32>
    %150 = arith.mulf %147, %149 : vector<72x64xf32>
    %c0_143 = arith.constant 0 : index
    %c0_144 = arith.constant 0 : index
    %151 = vector.load %arg8[%c0_143, %c0_144] : memref<1x64xf32, #tpu.memory_space<vmem>>, vector<1x64xf32>
    %152 = vector.broadcast %151 : vector<1x64xf32> to vector<72x64xf32>
    %153 = arith.addf %150, %152 : vector<72x64xf32>
    %c0_145 = arith.constant 0 : index
    %c0_146 = arith.constant 0 : index
    %c0_147 = arith.constant 0 : index
    %154 = vector.load %arg9[%c0_145, %c0_146, %c0_147] : memref<1x72x64xf32, #tpu.memory_space<vmem>>, vector<1x72x64xf32>
    %155 = vector.shape_cast %154 : vector<1x72x64xf32> to vector<72x64xf32>
    %156 = vector.shape_cast %153 : vector<72x64xf32> to vector<1x72x64xf32>
    tpu.vector_store %arg9[%c0_145, %c0_146, %c0_147], %156 {strides = array<i32>} : memref<1x72x64xf32, #tpu.memory_space<vmem>>, vector<1x72x64xf32>,
    return
  }
  func.func @transform_0(%arg0: i32) -> (i32, i32, i32) {
    %c0_i32 = arith.constant 0 : i32
    %c0_i32_0 = arith.constant 0 : i32
    %c0_i32_1 = arith.constant 0 : i32
    return %arg0, %c0_i32, %c0_i32_0 : i32, i32, i32
  }
  func.func @transform_1(%arg0: i32) -> (i32, i32, i32) {
    %c0_i32 = arith.constant 0 : i32
    %c0_i32_0 = arith.constant 0 : i32
    %c0_i32_1 = arith.constant 0 : i32
    %c0_i32_2 = arith.constant 0 : i32
    return %c0_i32, %c0_i32_0, %c0_i32_1 : i32, i32, i32
  }
  func.func @transform_2(%arg0: i32) -> (i32, i32) {
    %c0_i32 = arith.constant 0 : i32
    %c0_i32_0 = arith.constant 0 : i32
    %c0_i32_1 = arith.constant 0 : i32
    return %c0_i32, %c0_i32_0 : i32, i32
  }
  func.func @transform_3(%arg0: i32) -> (i32, i32) {
    %c0_i32 = arith.constant 0 : i32
    %c0_i32_0 = arith.constant 0 : i32
    %c0_i32_1 = arith.constant 0 : i32
    return %c0_i32, %c0_i32_0 : i32, i32
  }
  func.func @transform_4(%arg0: i32) -> (i32, i32) {
    %c0_i32 = arith.constant 0 : i32
    %c0_i32_0 = arith.constant 0 : i32
    %c0_i32_1 = arith.constant 0 : i32
    return %c0_i32, %c0_i32_0 : i32, i32
  }
  func.func @transform_5(%arg0: i32) -> (i32, i32) {
    %c0_i32 = arith.constant 0 : i32
    %c0_i32_0 = arith.constant 0 : i32
    %c0_i32_1 = arith.constant 0 : i32
    return %c0_i32, %c0_i32_0 : i32, i32
  }
  func.func @transform_6(%arg0: i32) -> (i32, i32) {
    %c0_i32 = arith.constant 0 : i32
    %c0_i32_0 = arith.constant 0 : i32
    %c0_i32_1 = arith.constant 0 : i32
    return %c0_i32, %c0_i32_0 : i32, i32
  }
  func.func @transform_7(%arg0: i32) -> (i32, i32) {
    %c0_i32 = arith.constant 0 : i32
    %c0_i32_0 = arith.constant 0 : i32
    %c0_i32_1 = arith.constant 0 : i32
    return %c0_i32, %c0_i32_0 : i32, i32
  }
  func.func @transform_8(%arg0: i32) -> (i32, i32, i32) {
    %c0_i32 = arith.constant 0 : i32
    %c0_i32_0 = arith.constant 0 : i32
    %c0_i32_1 = arith.constant 0 : i32
    return %arg0, %c0_i32, %c0_i32_0 : i32, i32, i32
  }
}

</mosaic_0001>

<llo_original>
// kernel: adapter_forward.1
$region0: #{adapter_forward.1}
  #allocation0 [shape = 'u32[]', space=smem, size = 0x4, offset = 0x4, fixed_abs, tag = 'smem constant byte address 0x4 - core index']
  #allocation1 [shape = 'u32[72,128]{1,0:T(1,128)}', space=vmem, size = 0x9000, scoped, tag = 'internal scratch']
  #allocation2 [shape = 'f32[72,144]{1,0:T(8,128)}', space=vmem, size = 0x12000, scoped, tag = 'scratch operand']
  #allocation3 [shape = 'f32[92,16]{1,0:T(8,128)}', space=vmem, size = 0xc000, scoped, tag = 'scratch operand']
  #allocation4 [shape = 'f32[72,64]{1,0:T(8,128)}', space=vmem, size = 0x9000, scoped, tag = 'scratch operand']
  %s0 = inlined_call_operand.vmem [shape: f32[8,82,16], index: 0, kind: input, shape index: {}]
  %s1 = inlined_call_operand.vmem [shape: f32[9,16,16], index: 1, kind: input, shape index: {}]
  %s2 = inlined_call_operand.vmem [shape: f32[144,64], index: 2, kind: input, shape index: {}]
  %s3 = inlined_call_operand.vmem [shape: f32[4,16], index: 3, kind: input, shape index: {}]
  %s4 = inlined_call_operand.vmem [shape: f32[16,4], index: 4, kind: input, shape index: {}]
  %s5 = inlined_call_operand.vmem [shape: f32[64,64], index: 5, kind: input, shape index: {}]
  %s6 = inlined_call_operand.vmem [shape: f32[1,64], index: 6, kind: input, shape index: {}]
  %s7 = inlined_call_operand.vmem [shape: f32[1,64], index: 7, kind: input, shape index: {}]
  %s8 = inlined_call_operand.vmem [shape: f32[2,72,64], index: 8, kind: output, shape index: {}]
  %s9 = sld [smem:[#allocation0]]
  $region65: #{adapter_forward.1} parent=0
    _
  %s11 = ssub.s32 1, %s9
  %s12 = scalar_select 0, %s11, %s9
  loop: start=0, step=1, limit=4
  $region2: #{adapter_forward.1} parent=0 // loop_pre_header
    _
  $region3: #{adapter_forward.1} parent=0 // loop_header
    %s14 = sphi 0, %s18
    %p15 = scmp.ge.s32.totalorder %s14, 4
    %s24 = sphi 0, %s26
    %s27 = sphi 0, %s24
    %s28 = sphi 0, %s27
    %s44 = sphi 0, %s28
    %s48 = sphi 0, %s48
    %s50 = sphi 0, %s48
    %s51 = sphi 0, %s50
    %s65 = sphi 0, %s51
    %s69 = sphi 0, %s69
    %s71 = sphi 0, %s69
    %s72 = sphi 0, %s71
    %s86 = sphi 0, %s72
    %s90 = sphi 0, %s90
    %s92 = sphi 0, %s90
    %s93 = sphi 0, %s92
    %s107 = sphi 0, %s93
    %s111 = sphi 0, %s111
    %s113 = sphi 0, %s111
    %s114 = sphi 0, %s113
    %s128 = sphi 0, %s114
    %s132 = sphi 0, %s132
    %s134 = sphi 0, %s132
    %s135 = sphi 0, %s134
    %s149 = sphi 0, %s135
    %s153 = sphi 0, %s153
    %s155 = sphi 0, %s153
    %s156 = sphi 0, %s155
    %s170 = sphi 0, %s156
    %s174 = sphi 0, %s174
    %s176 = sphi 0, %s174
    %s177 = sphi 0, %s176
    %s191 = sphi 0, %s177
    %s197 = sphi 0, %s199
    %s200 = sphi 0, %s197
    %s201 = sphi 0, %s200
    %s217 = sphi 0, %s201
  $region4: #{adapter_forward.1} parent=0 // loop_header_branch
    %17 = sbr.rel (%p15) target = $region8
  $region5: #{adapter_forward.1} parent=0 // loop_body
    %s19 = ssub.s32 %s14, 1
    %s20 = ssub.s32 %s14, 2
    %s21 = sadd.s32 %s14, 1
    %s22 = ssub.s32 %s14, %s21
    %p23 = scmp.eq.s32.totalorder %s22, 0
    %s25 = sadd.s32 %s24, 1
    %s26 = scalar_select %p23, %s24, %s25
    %p29 = pneg %p23
    %p30 = scmp.eq.s32.totalorder %s14, 1
    %p31 = por %p29, %p30
    %p32 = scmp.ne.s32.totalorder %s24, %s27
    %p33 = scmp.eq.s32.totalorder %s14, 0
    %p34 = por %p32, %p33
    %p35 = scmp.ne.s32.totalorder %s24, %s27
    %p36 = scmp.eq.s32.totalorder %s19, 1
    %p37 = por %p35, %p36
    %p38 = scmp.ne.s32.totalorder %s27, %s28
    %p39 = scmp.eq.s32.totalorder %s19, 0
    %p40 = por %p38, %p39
    %p41 = scmp.ne.s32.totalorder %s27, %s28
    %p42 = scmp.eq.s32.totalorder %s20, 1
    %p43 = por %p41, %p42
    %p45 = scmp.ne.s32.totalorder %s28, %s44
    %p46 = scmp.eq.s32.totalorder %s20, 0
    %p47 = por %p45, %p46
    %s49 = sadd.s32 %s48, 1
    %p52 = scmp.eq.s32.totalorder %s14, 1
    %p53 = scmp.ne.s32.totalorder %s48, %s50
    %p54 = scmp.eq.s32.totalorder %s14, 0
    %p55 = por %p53, %p54
    %p56 = scmp.ne.s32.totalorder %s48, %s50
    %p57 = scmp.eq.s32.totalorder %s19, 1
    %p58 = por %p56, %p57
    %p59 = scmp.ne.s32.totalorder %s50, %s51
    %p60 = scmp.eq.s32.totalorder %s19, 0
    %p61 = por %p59, %p60
    %p62 = scmp.ne.s32.totalorder %s50, %s51
    %p63 = scmp.eq.s32.totalorder %s20, 1
    %p64 = por %p62, %p63
    %p66 = scmp.ne.s32.totalorder %s51, %s65
    %p67 = scmp.eq.s32.totalorder %s20, 0
    %p68 = por %p66, %p67
    %s70 = sadd.s32 %s69, 1
    %p73 = scmp.eq.s32.totalorder %s14, 1
    %p74 = scmp.ne.s32.totalorder %s69, %s71
    %p75 = scmp.eq.s32.totalorder %s14, 0
    %p76 = por %p74, %p75
    %p77 = scmp.ne.s32.totalorder %s69, %s71
    %p78 = scmp.eq.s32.totalorder %s19, 1
    %p79 = por %p77, %p78
    %p80 = scmp.ne.s32.totalorder %s71, %s72
    %p81 = scmp.eq.s32.totalorder %s19, 0
    %p82 = por %p80, %p81
    %p83 = scmp.ne.s32.totalorder %s71, %s72
    %p84 = scmp.eq.s32.totalorder %s20, 1
    %p85 = por %p83, %p84
    %p87 = scmp.ne.s32.totalorder %s72, %s86
    %p88 = scmp.eq.s32.totalorder %s20, 0
    %p89 = por %p87, %p88
    %s91 = sadd.s32 %s90, 1
    %p94 = scmp.eq.s32.totalorder %s14, 1
    %p95 = scmp.ne.s32.totalorder %s90, %s92
    %p96 = scmp.eq.s32.totalorder %s14, 0
    %p97 = por %p95, %p96
    %p98 = scmp.ne.s32.totalorder %s90, %s92
    %p99 = scmp.eq.s32.totalorder %s19, 1
    %p100 = por %p98, %p99
    %p101 = scmp.ne.s32.totalorder %s92, %s93
    %p102 = scmp.eq.s32.totalorder %s19, 0
    %p103 = por %p101, %p102
    %p104 = scmp.ne.s32.totalorder %s92, %s93
    %p105 = scmp.eq.s32.totalorder %s20, 1
    %p106 = por %p104, %p105
    %p108 = scmp.ne.s32.totalorder %s93, %s107
    %p109 = scmp.eq.s32.totalorder %s20, 0
    %p110 = por %p108, %p109
    %s112 = sadd.s32 %s111, 1
    %p115 = scmp.eq.s32.totalorder %s14, 1
    %p116 = scmp.ne.s32.totalorder %s111, %s113
    %p117 = scmp.eq.s32.totalorder %s14, 0
    %p118 = por %p116, %p117
    %p119 = scmp.ne.s32.totalorder %s111, %s113
    %p120 = scmp.eq.s32.totalorder %s19, 1
    %p121 = por %p119, %p120
    %p122 = scmp.ne.s32.totalorder %s113, %s114
    %p123 = scmp.eq.s32.totalorder %s19, 0
    %p124 = por %p122, %p123
    %p125 = scmp.ne.s32.totalorder %s113, %s114
    %p126 = scmp.eq.s32.totalorder %s20, 1
    %p127 = por %p125, %p126
    %p129 = scmp.ne.s32.totalorder %s114, %s128
    %p130 = scmp.eq.s32.totalorder %s20, 0
    %p131 = por %p129, %p130
    %s133 = sadd.s32 %s132, 1
    %p136 = scmp.eq.s32.totalorder %s14, 1
    %p137 = scmp.ne.s32.totalorder %s132, %s134
    %p138 = scmp.eq.s32.totalorder %s14, 0
    %p139 = por %p137, %p138
    %p140 = scmp.ne.s32.totalorder %s132, %s134
    %p141 = scmp.eq.s32.totalorder %s19, 1
    %p142 = por %p140, %p141
    %p143 = scmp.ne.s32.totalorder %s134, %s135
    %p144 = scmp.eq.s32.totalorder %s19, 0
    %p145 = por %p143, %p144
    %p146 = scmp.ne.s32.totalorder %s134, %s135
    %p147 = scmp.eq.s32.totalorder %s20, 1
    %p148 = por %p146, %p147
    %p150 = scmp.ne.s32.totalorder %s135, %s149
    %p151 = scmp.eq.s32.totalorder %s20, 0
    %p152 = por %p150, %p151
    %s154 = sadd.s32 %s153, 1
    %p157 = scmp.eq.s32.totalorder %s14, 1
    %p158 = scmp.ne.s32.totalorder %s153, %s155
    %p159 = scmp.eq.s32.totalorder %s14, 0
    %p160 = por %p158, %p159
    %p161 = scmp.ne.s32.totalorder %s153, %s155
    %p162 = scmp.eq.s32.totalorder %s19, 1
    %p163 = por %p161, %p162
    %p164 = scmp.ne.s32.totalorder %s155, %s156
    %p165 = scmp.eq.s32.totalorder %s19, 0
    %p166 = por %p164, %p165
    %p167 = scmp.ne.s32.totalorder %s155, %s156
    %p168 = scmp.eq.s32.totalorder %s20, 1
    %p169 = por %p167, %p168
    %p171 = scmp.ne.s32.totalorder %s156, %s170
    %p172 = scmp.eq.s32.totalorder %s20, 0
    %p173 = por %p171, %p172
    %s175 = sadd.s32 %s174, 1
    %p178 = scmp.eq.s32.totalorder %s14, 1
    %p179 = scmp.ne.s32.totalorder %s174, %s176
    %p180 = scmp.eq.s32.totalorder %s14, 0
    %p181 = por %p179, %p180
    %p182 = scmp.ne.s32.totalorder %s174, %s176
    %p183 = scmp.eq.s32.totalorder %s19, 1
    %p184 = por %p182, %p183
    %p185 = scmp.ne.s32.totalorder %s176, %s177
    %p186 = scmp.eq.s32.totalorder %s19, 0
    %p187 = por %p185, %p186
    %p188 = scmp.ne.s32.totalorder %s176, %s177
    %p189 = scmp.eq.s32.totalorder %s20, 1
    %p190 = por %p188, %p189
    %p192 = scmp.ne.s32.totalorder %s177, %s191
    %p193 = scmp.eq.s32.totalorder %s20, 0
    %p194 = por %p192, %p193
    %s195 = ssub.s32 %s14, %s21
    %p196 = scmp.eq.s32.totalorder %s195, 0
    %s198 = sadd.s32 %s197, 1
    %s199 = scalar_select %p196, %s197, %s198
    %p202 = pneg %p196
    %p203 = scmp.eq.s32.totalorder %s14, 1
    %p204 = por %p202, %p203
    %p205 = scmp.ne.s32.totalorder %s197, %s200
    %p206 = scmp.eq.s32.totalorder %s14, 0
    %p207 = por %p205, %p206
    %p208 = scmp.ne.s32.totalorder %s197, %s200
    %p209 = scmp.eq.s32.totalorder %s19, 1
    %p210 = por %p208, %p209
    %p211 = scmp.ne.s32.totalorder %s200, %s201
    %p212 = scmp.eq.s32.totalorder %s19, 0
    %p213 = por %p211, %p212
    %p214 = scmp.ne.s32.totalorder %s200, %s201
    %p215 = scmp.eq.s32.totalorder %s20, 1
    %p216 = por %p214, %p215
    %p218 = scmp.ne.s32.totalorder %s201, %s217
    %p219 = scmp.eq.s32.totalorder %s20, 0
    %p220 = por %p218, %p219
    %p221 = scmp.le.s32.totalorder 1, %s14
    %p222 = scmp.lt.s32.totalorder %s14, 3
    %p223 = pnand %p221, %p222
    %p224 = pneg %p223
    // Predicated region
    $region9: #{adapter_forward.1} parent=5 // pred_check
      _
    $region10: #{adapter_forward.1} parent=5 // pred_check_branch
      %226 = sbr.rel (%p223) target = $region12
    $region11: #{adapter_forward.1} parent=5 // pred_region
      %s227 = ssub.s32 %s14, 1
      // Predicated region
      $region13: #{adapter_forward.1} parent=11 // pred_check
        %p228 = pneg %p61
      $region14: #{adapter_forward.1} parent=11 // pred_check_branch
        %230 = sbr.rel (%p228) target = $region16
      $region15: #{adapter_forward.1} parent=11 // pred_region
        _
      $region16: #{adapter_forward.1} parent=11 // pred_fallthru
        _
      // Predicated region
      $region17: #{adapter_forward.1} parent=11 // pred_check
        %p231 = pneg %p82
      $region18: #{adapter_forward.1} parent=11 // pred_check_branch
        %233 = sbr.rel (%p231) target = $region20
      $region19: #{adapter_forward.1} parent=11 // pred_region
        _
      $region20: #{adapter_forward.1} parent=11 // pred_fallthru
        _
      // Predicated region
      $region21: #{adapter_forward.1} parent=11 // pred_check
        %p234 = pneg %p103
      $region22: #{adapter_forward.1} parent=11 // pred_check_branch
        %236 = sbr.rel (%p234) target = $region24
      $region23: #{adapter_forward.1} parent=11 // pred_region
        _
      $region24: #{adapter_forward.1} parent=11 // pred_fallthru
        _
      // Predicated region
      $region25: #{adapter_forward.1} parent=11 // pred_check
        %p237 = pneg %p124
      $region26: #{adapter_forward.1} parent=11 // pred_check_branch
        %239 = sbr.rel (%p237) target = $region28
      $region27: #{adapter_forward.1} parent=11 // pred_region
        _
      $region28: #{adapter_forward.1} parent=11 // pred_fallthru
        _
      // Predicated region
      $region29: #{adapter_forward.1} parent=11 // pred_check
        %p240 = pneg %p145
      $region30: #{adapter_forward.1} parent=11 // pred_check_branch
        %242 = sbr.rel (%p240) target = $region32
      $region31: #{adapter_forward.1} parent=11 // pred_region
        _
      $region32: #{adapter_forward.1} parent=11 // pred_fallthru
        _
      // Predicated region
      $region33: #{adapter_forward.1} parent=11 // pred_check
        %p243 = pneg %p166
      $region34: #{adapter_forward.1} parent=11 // pred_check_branch
        %245 = sbr.rel (%p243) target = $region36
      $region35: #{adapter_forward.1} parent=11 // pred_region
        _
      $region36: #{adapter_forward.1} parent=11 // pred_fallthru
        _
      // Predicated region
      $region37: #{adapter_forward.1} parent=11 // pred_check
        %p246 = pneg %p187
      $region38: #{adapter_forward.1} parent=11 // pred_check_branch
        %248 = sbr.rel (%p246) target = $region40
      $region39: #{adapter_forward.1} parent=11 // pred_region
        _
      $region40: #{adapter_forward.1} parent=11 // pred_fallthru
        _
    $region12: #{adapter_forward.1} parent=5 // pred_fallthru
      _
    %p249 = scmp.lt.s32.totalorder %s14, 2
    // Predicated region
    $region41: #{adapter_forward.1} parent=5 // pred_check
      %p250 = pneg %p249
    $region42: #{adapter_forward.1} parent=5 // pred_check_branch
      %252 = sbr.rel (%p250) target = $region44
    $region43: #{adapter_forward.1} parent=5 // pred_region
      // Predicated region
      $region45: #{adapter_forward.1} parent=43 // pred_check
        %p253 = pneg %p34
      $region46: #{adapter_forward.1} parent=43 // pred_check_branch
        %255 = sbr.rel (%p253) target = $region48
      $region47: #{adapter_forward.1} parent=43 // pred_region
        %s256 = smul.u32 4, %s14
        %p257 = scmp.lt.s32.totalorder %s256, 7
        %s258 = scalar_select %p257, %s256, 7
        %s259 = smul.addr %s258, 11
        %s260 = smul.addr %s259, 8
        %s261 = scalar_lea.vmem %s0, %s260
        %s262 = smul.u32 4, %s14
      $region48: #{adapter_forward.1} parent=43 // pred_fallthru
        _
    $region44: #{adapter_forward.1} parent=5 // pred_fallthru
      _
    %p263 = scmp.le.s32.totalorder 1, %s14
    %p264 = scmp.lt.s32.totalorder %s14, 3
    %p265 = pnand %p263, %p264
    %p266 = pneg %p265
    // Predicated region
    $region49: #{adapter_forward.1} parent=5 // pred_check
      _
    $region50: #{adapter_forward.1} parent=5 // pred_check_branch
      %268 = sbr.rel (%p265) target = $region52
    $region51: #{adapter_forward.1} parent=5 // pred_region
      %s269 = ssub.s32 %s14, 1
      %s270 = smul.u32 4, %s19
      %p271 = scmp.lt.s32.totalorder %s270, 7
      %s272 = scalar_select %p271, %s270, 7
      %s273 = smul.addr %s272, 11
      %s274 = smul.addr %s273, 8
      %s275 = scalar_lea.vmem %s0, %s274
      %p276 = pneg %p40
      %p277 = pneg %p37
      %p278 = pneg %p61
      %p279 = pneg %p58
      %p280 = pneg %p82
      %p281 = pneg %p79
      %p282 = pneg %p103
      %p283 = pneg %p100
      %p284 = pneg %p124
      %p285 = pneg %p121
      %p286 = pneg %p145
      %p287 = pneg %p142
      %p288 = pneg %p166
      %p289 = pneg %p163
      %p290 = pneg %p187
      %p291 = pneg %p184
      %p292 = pneg %p213
      %p293 = pneg %p210
      %p294 = scmp.lt.s32.totalorder %s19, 1
      %s295 = scalar_select %p294, %s19, 1
      %s296 = smul.addr %s295, 9
      %s297 = smul.addr %s296, 8
      %s298 = scalar_lea.vmem %s8, %s297
      %s299 = smul.u32 4, %s19
      %p300 = scmp.lt.s32.totalorder %s299, 7
      %s301 = scalar_select %p300, %s299, 7
      %s302 = smul.addr %s301, 11
      %s303 = smul.addr %s302, 8
      %s304 = scalar_lea.vmem %s0, %s303
      %s305 = smul.u32 4, %s19
      %p306 = scmp.lt.s32.totalorder %s19, 1
      %s307 = scalar_select %p306, %s19, 1
      %s308 = smul.addr %s307, 9
      %s309 = smul.addr %s308, 8
      %s310 = scalar_lea.vmem %s8, %s309
      %vm311 = vcmask 130048
      %312 = vst.msk [vmem:[#allocation3] sm:$0xff] %vm311, 0.0
      %vm313 = vcmask 123904
      %314 = vst.msk [vmem:[#allocation3 + $0x8] sm:$0x3] %vm313, 0.0
      %315 = vst.msk [vmem:[#allocation3 + $0x52] sm:$0xff] %vm311, 0.0
      %316 = vst.msk [vmem:[#allocation3 + $0x5a] sm:$0x3] %vm313, 0.0
      %v317 = vld [vmem:[%s304] sm:$0xff]
      %v318 = vld [vmem:[%s304 + $0x8] sm:$0xff]
      %v319 = vld [vmem:[%s304 + $0x10] sm:$0xff]
      %v320 = vld [vmem:[%s304 + $0x18] sm:$0xff]
      %v321 = vld [vmem:[%s304 + $0x20] sm:$0xff]
      %v322 = vld [vmem:[%s304 + $0x28] sm:$0xff]
      %v323 = vld [vmem:[%s304 + $0x30] sm:$0xff]
      %v324 = vld [vmem:[%s304 + $0x38] sm:$0xff]
      %v325 = vld [vmem:[%s304 + $0x40] sm:$0xff]
      %v326 = vld [vmem:[%s304 + $0x48] sm:$0xff]
      %v327 = vld [vmem:[%s304 + $0x50] sm:$0x3]
      %v328 = vsel %vm311, %v317, 0.0
      %v329 = vsel %vm311, %v318, 0.0
      %v330 = vadd.f32 %v328, %v329
      %v331 = vsel %vm311, %v319, 0.0
      %v332 = vadd.f32 %v330, %v331
      %v333 = vsel %vm311, %v320, 0.0
      %v334 = vadd.f32 %v332, %v333
      %v335 = vsel %vm311, %v321, 0.0
      %v336 = vadd.f32 %v334, %v335
      %v337 = vsel %vm311, %v322, 0.0
      %v338 = vadd.f32 %v336, %v337
      %v339 = vsel %vm311, %v323, 0.0
      %v340 = vadd.f32 %v338, %v339
      %v341 = vsel %vm311, %v324, 0.0
      %v342 = vadd.f32 %v340, %v341
      %v343 = vsel %vm311, %v325, 0.0
      %v344 = vadd.f32 %v342, %v343
      %v345 = vsel %vm311, %v326, 0.0
      %v346 = vadd.f32 %v344, %v345
      %v347 = vsel %vm313, %v327, 0.0
      %v348 = vadd.f32 %v346, %v347
      %v349 = vrot.slane %v348, 4
      %v350 = vadd.f32 %v348, %v349
      %v351 = vrot.slane %v350, 2
      %v352 = vadd.f32 %v350, %v351
      %v353 = vrot.slane %v352, 1
      %v354 = vadd.f32 %v352, %v353
      %v355 = vadd.f32 %v354, 0.0
      %s356 = scalar_lea.vmem %s304, 88
      %v357 = vld [vmem:[%s356] sm:$0xff]
      %v358 = vld [vmem:[%s356 + $0x8] sm:$0xff]
      %v359 = vld [vmem:[%s356 + $0x10] sm:$0xff]
      %v360 = vld [vmem:[%s356 + $0x18] sm:$0xff]
      %v361 = vld [vmem:[%s356 + $0x20] sm:$0xff]
      %v362 = vld [vmem:[%s356 + $0x28] sm:$0xff]
      %v363 = vld [vmem:[%s356 + $0x30] sm:$0xff]
      %v364 = vld [vmem:[%s356 + $0x38] sm:$0xff]
      %v365 = vld [vmem:[%s356 + $0x40] sm:$0xff]
      %v366 = vld [vmem:[%s356 + $0x48] sm:$0xff]
      %v367 = vld [vmem:[%s356 + $0x50] sm:$0x3]
      %v368 = vsel %vm311, %v357, 0.0
      %v369 = vsel %vm311, %v358, 0.0
      %v370 = vadd.f32 %v368, %v369
      %v371 = vsel %vm311, %v359, 0.0
      %v372 = vadd.f32 %v370, %v371
      %v373 = vsel %vm311, %v360, 0.0
      %v374 = vadd.f32 %v372, %v373
      %v375 = vsel %vm311, %v361, 0.0
      %v376 = vadd.f32 %v374, %v375
      %v377 = vsel %vm311, %v362, 0.0
      %v378 = vadd.f32 %v376, %v377
      %v379 = vsel %vm311, %v363, 0.0
      %v380 = vadd.f32 %v378, %v379
      %v381 = vsel %vm311, %v364, 0.0
      %v382 = vadd.f32 %v380, %v381
      %v383 = vsel %vm311, %v365, 0.0
      %v384 = vadd.f32 %v382, %v383
      %v385 = vsel %vm311, %v366, 0.0
      %v386 = vadd.f32 %v384, %v385
      %v387 = vsel %vm313, %v367, 0.0
      %v388 = vadd.f32 %v386, %v387
      %v389 = vrot.slane %v388, 4
      %v390 = vadd.f32 %v388, %v389
      %v391 = vrot.slane %v390, 2
      %v392 = vadd.f32 %v390, %v391
      %v393 = vrot.slane %v392, 1
      %v394 = vadd.f32 %v392, %v393
      %v395 = vadd.f32 %v355, %v394
      %s396 = scalar_lea.vmem %s304, 176
      %v397 = vld [vmem:[%s396] sm:$0xff]
      %v398 = vld [vmem:[%s396 + $0x8] sm:$0xff]
      %v399 = vld [vmem:[%s396 + $0x10] sm:$0xff]
      %v400 = vld [vmem:[%s396 + $0x18] sm:$0xff]
      %v401 = vld [vmem:[%s396 + $0x20] sm:$0xff]
      %v402 = vld [vmem:[%s396 + $0x28] sm:$0xff]
      %v403 = vld [vmem:[%s396 + $0x30] sm:$0xff]
      %v404 = vld [vmem:[%s396 + $0x38] sm:$0xff]
      %v405 = vld [vmem:[%s396 + $0x40] sm:$0xff]
      %v406 = vld [vmem:[%s396 + $0x48] sm:$0xff]
      %v407 = vld [vmem:[%s396 + $0x50] sm:$0x3]
      %v408 = vsel %vm311, %v397, 0.0
      %v409 = vsel %vm311, %v398, 0.0
      %v410 = vadd.f32 %v408, %v409
      %v411 = vsel %vm311, %v399, 0.0
      %v412 = vadd.f32 %v410, %v411
      %v413 = vsel %vm311, %v400, 0.0
      %v414 = vadd.f32 %v412, %v413
      %v415 = vsel %vm311, %v401, 0.0
      %v416 = vadd.f32 %v414, %v415
      %v417 = vsel %vm311, %v402, 0.0
      %v418 = vadd.f32 %v416, %v417
      %v419 = vsel %vm311, %v403, 0.0
      %v420 = vadd.f32 %v418, %v419
      %v421 = vsel %vm311, %v404, 0.0
      %v422 = vadd.f32 %v420, %v421
      %v423 = vsel %vm311, %v405, 0.0
      %v424 = vadd.f32 %v422, %v423
      %v425 = vsel %vm311, %v406, 0.0
      %v426 = vadd.f32 %v424, %v425
      %v427 = vsel %vm313, %v407, 0.0
      %v428 = vadd.f32 %v426, %v427
      %v429 = vrot.slane %v428, 4
      %v430 = vadd.f32 %v428, %v429
      %v431 = vrot.slane %v430, 2
      %v432 = vadd.f32 %v430, %v431
      %v433 = vrot.slane %v432, 1
      %v434 = vadd.f32 %v432, %v433
      %v435 = vadd.f32 %v395, %v434
      %s436 = scalar_lea.vmem %s304, 264
      %v437 = vld [vmem:[%s436] sm:$0xff]
      %v438 = vld [vmem:[%s436 + $0x8] sm:$0xff]
      %v439 = vld [vmem:[%s436 + $0x10] sm:$0xff]
      %v440 = vld [vmem:[%s436 + $0x18] sm:$0xff]
      %v441 = vld [vmem:[%s436 + $0x20] sm:$0xff]
      %v442 = vld [vmem:[%s436 + $0x28] sm:$0xff]
      %v443 = vld [vmem:[%s436 + $0x30] sm:$0xff]
      %v444 = vld [vmem:[%s436 + $0x38] sm:$0xff]
      %v445 = vld [vmem:[%s436 + $0x40] sm:$0xff]
      %v446 = vld [vmem:[%s436 + $0x48] sm:$0xff]
      %v447 = vld [vmem:[%s436 + $0x50] sm:$0x3]
      %v448 = vsel %vm311, %v437, 0.0
      %v449 = vsel %vm311, %v438, 0.0
      %v450 = vadd.f32 %v448, %v449
      %v451 = vsel %vm311, %v439, 0.0
      %v452 = vadd.f32 %v450, %v451
      %v453 = vsel %vm311, %v440, 0.0
      %v454 = vadd.f32 %v452, %v453
      %v455 = vsel %vm311, %v441, 0.0
      %v456 = vadd.f32 %v454, %v455
      %v457 = vsel %vm311, %v442, 0.0
      %v458 = vadd.f32 %v456, %v457
      %v459 = vsel %vm311, %v443, 0.0
      %v460 = vadd.f32 %v458, %v459
      %v461 = vsel %vm311, %v444, 0.0
      %v462 = vadd.f32 %v460, %v461
      %v463 = vsel %vm311, %v445, 0.0
      %v464 = vadd.f32 %v462, %v463
      %v465 = vsel %vm311, %v446, 0.0
      %v466 = vadd.f32 %v464, %v465
      %v467 = vsel %vm313, %v447, 0.0
      %v468 = vadd.f32 %v466, %v467
      %v469 = vrot.slane %v468, 4
      %v470 = vadd.f32 %v468, %v469
      %v471 = vrot.slane %v470, 2
      %v472 = vadd.f32 %v470, %v471
      %v473 = vrot.slane %v472, 1
      %v474 = vadd.f32 %v472, %v473
      %v475 = vadd.f32 %v435, %v474
      %v476 = vmul.f32 %v475, 0.00390625
      %v477 = vld [vmem:[%s3] sm:$0xf]
      %v478 = vmul.f32 %v477, %v476
      %vm479 = vcmask 125952
      %v480 = vsel %vm479, %v478, 0.0
      %481 = vadd.xlane.f32.xlu0 %v480
      %v482 = vpop.xlane.xlu0 %481
      %v483 = vmax.f32 %v482, 0.0
      %v484 = vld [vmem:[%s4] sm:$0xff]
      %v485 = vld [vmem:[%s4 + $0x8] sm:$0xff]
      %vm486 = vcmask 31744
      %v488 = vsel %vm486, %v484, 0
      %v491 = vsel %vm486, %v485, 0
      %vm493 = vcmask 1043456
      %v495 = vsel %vm493, %v483, 0
      %497 = vmatpush.msra.mxu0 0.0
      %498 = vmatpush.msra.mxu0 0.0
      %499 = vmatpush.msra.mxu0 0.0
      %500 = vmatpush.msra.mxu0 0.0
      %501 = vmatpush.msra.mxu0 0.0
      %502 = vmatpush.msra.mxu0 0.0
      %503 = vmatpush.msra.mxu0 0.0
      %504 = vmatpush.msra.mxu0 0.0
      %505 = vmatpush.msra.mxu0 0.0
      %506 = vmatpush.msra.mxu0 0.0
      %507 = vmatpush.msra.mxu0 0.0
      %508 = vmatpush.msra.mxu0 0.0
      %509 = vmatpush.msra.mxu0 0.0
      %510 = vmatpush.msra.mxu0 0.0
      %511 = vmatpush.msra.mxu0 0.0
      %512 = vmatpush.msra.mxu0 %v495
      %513 = vmatmul.f32.gmra.mxu0 %v488
      %v514 = vpop.f32.mrf.mxu0
      %v515 = vadd.f32 0.0, %v514
      %516 = vmatmul.f32.gmra.mxu0 %v491
      %v517 = vpop.f32.mrf.mxu0
      %v518 = vadd.f32 0.0, %v517
      %519 = vdwg.mxu0
      %v520 = vxor.u32 %v515, 2147483648
      %v521 = vxor.u32 %v518, 2147483648
      %v522 = vmul.f32 %v520, 1.442695
      %v523 = vpow.pop %v522
      %v524 = vmul.f32 %v521, 1.442695
      %v525 = vpow.pop %v524
      %v526 = vadd.f32 %v523, 1.0
      %v527 = vadd.f32 %v525, 1.0
      %v528 = vrcp.pop %v526
      %v529 = vmul.f32 %v526, %v528
      %v530 = vsub.f32 1.0, %v529
      %v531 = vmul.f32 %v528, %v530
      %v532 = vadd.f32 %v528, %v531
      %vm533 = vweird.f32 %v526
      %vm534 = vweird.f32 %v528
      %vm535 = vmor %vm533, %vm534
      %v536 = vsel %vm535, %v528, %v532
      %v537 = vand.u32 2147483647, %v526
      %vm538 = vcmp.eq.f32.partialorder %v537, 8.507059e+37
      %v539 = vand.u32 %v526, 2147483648
      %v540 = vor.u32 1.1754944e-38, %v539
      %v541 = vsel %vm538, %v540, %v536
      %v542 = vmul.f32 1.0, %v541
      %v543 = vrcp.pop %v527
      %v544 = vmul.f32 %v527, %v543
      %v545 = vsub.f32 1.0, %v544
      %v546 = vmul.f32 %v543, %v545
      %v547 = vadd.f32 %v543, %v546
      %vm548 = vweird.f32 %v527
      %vm549 = vweird.f32 %v543
      %vm550 = vmor %vm548, %vm549
      %v551 = vsel %vm550, %v543, %v547
      %v552 = vand.u32 2147483647, %v527
      %vm553 = vcmp.eq.f32.partialorder %v552, 8.507059e+37
      %v554 = vand.u32 %v527, 2147483648
      %v555 = vor.u32 1.1754944e-38, %v554
      %v556 = vsel %vm553, %v555, %v551
      %v557 = vmul.f32 1.0, %v556
      %v558 = vld [vmem:[%s1] sm:$0xff]
      %v559 = vld [vmem:[%s1 + $0x8] sm:$0xff]
      %v560 = vld [vmem:[%s1 + $0x10] sm:$0xff]
      %v561 = vld [vmem:[%s1 + $0x18] sm:$0xff]
      %v562 = vld [vmem:[%s1 + $0x20] sm:$0xff]
      %v563 = vld [vmem:[%s1 + $0x28] sm:$0xff]
      %v564 = vld [vmem:[%s1 + $0x30] sm:$0xff]
      %v565 = vld [vmem:[%s1 + $0x38] sm:$0xff]
      %v566 = vld [vmem:[%s1 + $0x40] sm:$0xff]
      %v567 = vld [vmem:[%s1 + $0x48] sm:$0xff]
      %v568 = vld [vmem:[%s1 + $0x50] sm:$0xff]
      %v569 = vld [vmem:[%s1 + $0x58] sm:$0xff]
      %v570 = vld [vmem:[%s1 + $0x60] sm:$0xff]
      %v571 = vld [vmem:[%s1 + $0x68] sm:$0xff]
      %v572 = vld [vmem:[%s1 + $0x70] sm:$0xff]
      %v573 = vld [vmem:[%s1 + $0x78] sm:$0xff]
      %v574 = vld [vmem:[%s1 + $0x80] sm:$0xff]
      %v575 = vld [vmem:[%s1 + $0x88] sm:$0xff]
      %577 = vset.pattern.permute.xlu0 0
      %578 = vperm.xlu0 %577, %v542
      %v579 = vpop.permute.xlu0 %578
      %582 = vset.pattern.permute.xlu0 0
      %583 = vperm.xlu0 %582, %v557
      %v584 = vpop.permute.xlu0 %583
      %v586 = vmul.f32 %v558, %v579
      %v587 = vmul.f32 %v559, %v584
      %v588 = vmul.f32 %v560, %v579
      %v589 = vmul.f32 %v561, %v584
      %v590 = vmul.f32 %v562, %v579
      %v591 = vmul.f32 %v563, %v584
      %v592 = vmul.f32 %v564, %v579
      %v593 = vmul.f32 %v565, %v584
      %v594 = vmul.f32 %v566, %v579
      %v595 = vmul.f32 %v567, %v584
      %v596 = vmul.f32 %v568, %v579
      %v597 = vmul.f32 %v569, %v584
      %v598 = vmul.f32 %v570, %v579
      %v599 = vmul.f32 %v571, %v584
      %v600 = vmul.f32 %v572, %v579
      %v601 = vmul.f32 %v573, %v584
      %v602 = vmul.f32 %v574, %v579
      %v603 = vmul.f32 %v575, %v584
      %v604 = vld [vmem:[%s436] sm:$0xff]
      %v605 = vld [vmem:[%s436 + $0x8] sm:$0xff]
      %v606 = vld [vmem:[%s436 + $0x10] sm:$0xff]
      %v607 = vld [vmem:[%s436 + $0x18] sm:$0xff]
      %v608 = vld [vmem:[%s436 + $0x20] sm:$0xff]
      %v609 = vld [vmem:[%s436 + $0x28] sm:$0xff]
      %v610 = vld [vmem:[%s436 + $0x30] sm:$0xff]
      %v611 = vld [vmem:[%s436 + $0x38] sm:$0xff]
      %v612 = vld [vmem:[%s436 + $0x40] sm:$0xff]
      %613 = vst.msk [vmem:[#allocation2] sm:$0xff] %vm311, %v604
      %614 = vst.msk [vmem:[#allocation2 + $0x10] sm:$0xff] %vm311, %v605
      %615 = vst.msk [vmem:[#allocation2 + $0x20] sm:$0xff] %vm311, %v606
      %616 = vst.msk [vmem:[#allocation2 + $0x30] sm:$0xff] %vm311, %v607
      %617 = vst.msk [vmem:[#allocation2 + $0x40] sm:$0xff] %vm311, %v608
      %618 = vst.msk [vmem:[#allocation2 + $0x50] sm:$0xff] %vm311, %v609
      %619 = vst.msk [vmem:[#allocation2 + $0x60] sm:$0xff] %vm311, %v610
      %620 = vst.msk [vmem:[#allocation2 + $0x70] sm:$0xff] %vm311, %v611
      %621 = vst.msk [vmem:[#allocation2 + $0x80] sm:$0xff] %vm311, %v612
      %v622 = vld [vmem:[%s396 + $0x1] sm:$0xff]
      %v623 = vld [vmem:[%s396 + $0x9] sm:$0xff]
      %v624 = vld [vmem:[%s396 + $0x11] sm:$0xff]
      %v625 = vld [vmem:[%s396 + $0x19] sm:$0xff]
      %v626 = vld [vmem:[%s396 + $0x21] sm:$0xff]
      %v627 = vld [vmem:[%s396 + $0x29] sm:$0xff]
      %v628 = vld [vmem:[%s396 + $0x31] sm:$0xff]
      %v629 = vld [vmem:[%s396 + $0x39] sm:$0xff]
      %v630 = vld [vmem:[%s396 + $0x41] sm:$0xff]
      %640 = vrot.lane.b32.xlu0 %v622, 16
      %v641 = vpop.permute.xlu0 %640
      %642 = vrot.lane.b32.xlu0 %v623, 16
      %v643 = vpop.permute.xlu0 %642
      %644 = vrot.lane.b32.xlu0 %v624, 16
      %v645 = vpop.permute.xlu0 %644
      %646 = vrot.lane.b32.xlu0 %v625, 16
      %v647 = vpop.permute.xlu0 %646
      %648 = vrot.lane.b32.xlu0 %v626, 16
      %v649 = vpop.permute.xlu0 %648
      %650 = vrot.lane.b32.xlu0 %v627, 16
      %v651 = vpop.permute.xlu0 %650
      %652 = vrot.lane.b32.xlu0 %v628, 16
      %v653 = vpop.permute.xlu0 %652
      %654 = vrot.lane.b32.xlu0 %v629, 16
      %v655 = vpop.permute.xlu0 %654
      %656 = vrot.lane.b32.xlu0 %v630, 16
      %v657 = vpop.permute.xlu0 %656
      %vm667 = vcmask 261248
      %668 = vst.msk [vmem:[#allocation2] sm:$0xff] %vm667, %v641
      %669 = vst.msk [vmem:[#allocation2 + $0x10] sm:$0xff] %vm667, %v643
      %670 = vst.msk [vmem:[#allocation2 + $0x20] sm:$0xff] %vm667, %v645
      %671 = vst.msk [vmem:[#allocation2 + $0x30] sm:$0xff] %vm667, %v647
      %672 = vst.msk [vmem:[#allocation2 + $0x40] sm:$0xff] %vm667, %v649
      %673 = vst.msk [vmem:[#allocation2 + $0x50] sm:$0xff] %vm667, %v651
      %674 = vst.msk [vmem:[#allocation2 + $0x60] sm:$0xff] %vm667, %v653
      %675 = vst.msk [vmem:[#allocation2 + $0x70] sm:$0xff] %vm667, %v655
      %676 = vst.msk [vmem:[#allocation2 + $0x80] sm:$0xff] %vm667, %v657
      %v677 = vld [vmem:[%s436 + $0x1] sm:$0xff]
      %v678 = vld [vmem:[%s436 + $0x9] sm:$0xff]
      %v679 = vld [vmem:[%s436 + $0x11] sm:$0xff]
      %v680 = vld [vmem:[%s436 + $0x19] sm:$0xff]
      %v681 = vld [vmem:[%s436 + $0x21] sm:$0xff]
      %v682 = vld [vmem:[%s436 + $0x29] sm:$0xff]
      %v683 = vld [vmem:[%s436 + $0x31] sm:$0xff]
      %v684 = vld [vmem:[%s436 + $0x39] sm:$0xff]
      %v685 = vld [vmem:[%s436 + $0x41] sm:$0xff]
      %695 = vrot.lane.b32.xlu0 %v677, 32
      %v696 = vpop.permute.xlu0 %695
      %697 = vrot.lane.b32.xlu0 %v678, 32
      %v698 = vpop.permute.xlu0 %697
      %699 = vrot.lane.b32.xlu0 %v679, 32
      %v700 = vpop.permute.xlu0 %699
      %701 = vrot.lane.b32.xlu0 %v680, 32
      %v702 = vpop.permute.xlu0 %701
      %703 = vrot.lane.b32.xlu0 %v681, 32
      %v704 = vpop.permute.xlu0 %703
      %705 = vrot.lane.b32.xlu0 %v682, 32
      %v706 = vpop.permute.xlu0 %705
      %707 = vrot.lane.b32.xlu0 %v683, 32
      %v708 = vpop.permute.xlu0 %707
      %709 = vrot.lane.b32.xlu0 %v684, 32
      %v710 = vpop.permute.xlu0 %709
      %711 = vrot.lane.b32.xlu0 %v685, 32
      %v712 = vpop.permute.xlu0 %711
      %vm722 = vcmask 392448
      %723 = vst.msk [vmem:[#allocation2] sm:$0xff] %vm722, %v696
      %724 = vst.msk [vmem:[#allocation2 + $0x10] sm:$0xff] %vm722, %v698
      %725 = vst.msk [vmem:[#allocation2 + $0x20] sm:$0xff] %vm722, %v700
      %726 = vst.msk [vmem:[#allocation2 + $0x30] sm:$0xff] %vm722, %v702
      %727 = vst.msk [vmem:[#allocation2 + $0x40] sm:$0xff] %vm722, %v704
      %728 = vst.msk [vmem:[#allocation2 + $0x50] sm:$0xff] %vm722, %v706
      %729 = vst.msk [vmem:[#allocation2 + $0x60] sm:$0xff] %vm722, %v708
      %730 = vst.msk [vmem:[#allocation2 + $0x70] sm:$0xff] %vm722, %v710
      %731 = vst.msk [vmem:[#allocation2 + $0x80] sm:$0xff] %vm722, %v712
      %v732 = vld [vmem:[%s356 + $0x9] sm:$0xff]
      %v733 = vld [vmem:[%s356 + $0x11] sm:$0xff]
      %v734 = vld [vmem:[%s356 + $0x19] sm:$0xff]
      %v735 = vld [vmem:[%s356 + $0x21] sm:$0xff]
      %v736 = vld [vmem:[%s356 + $0x29] sm:$0xff]
      %v737 = vld [vmem:[%s356 + $0x31] sm:$0xff]
      %v738 = vld [vmem:[%s356 + $0x39] sm:$0xff]
      %v739 = vld [vmem:[%s356 + $0x41] sm:$0xff]
      %v740 = vld [vmem:[%s356 + $0x49] sm:$0xff]
      %750 = vrot.lane.b32.xlu0 %v732, 48
      %v751 = vpop.permute.xlu0 %750
      %752 = vrot.lane.b32.xlu0 %v733, 48
      %v753 = vpop.permute.xlu0 %752
      %754 = vrot.lane.b32.xlu0 %v734, 48
      %v755 = vpop.permute.xlu0 %754
      %756 = vrot.lane.b32.xlu0 %v735, 48
      %v757 = vpop.permute.xlu0 %756
      %758 = vrot.lane.b32.xlu0 %v736, 48
      %v759 = vpop.permute.xlu0 %758
      %760 = vrot.lane.b32.xlu0 %v737, 48
      %v761 = vpop.permute.xlu0 %760
      %762 = vrot.lane.b32.xlu0 %v738, 48
      %v763 = vpop.permute.xlu0 %762
      %764 = vrot.lane.b32.xlu0 %v739, 48
      %v765 = vpop.permute.xlu0 %764
      %766 = vrot.lane.b32.xlu0 %v740, 48
      %v767 = vpop.permute.xlu0 %766
      %vm777 = vcmask 523648
      %778 = vst.msk [vmem:[#allocation2] sm:$0xff] %vm777, %v751
      %779 = vst.msk [vmem:[#allocation2 + $0x10] sm:$0xff] %vm777, %v753
      %780 = vst.msk [vmem:[#allocation2 + $0x20] sm:$0xff] %vm777, %v755
      %781 = vst.msk [vmem:[#allocation2 + $0x30] sm:$0xff] %vm777, %v757
      %782 = vst.msk [vmem:[#allocation2 + $0x40] sm:$0xff] %vm777, %v759
      %783 = vst.msk [vmem:[#allocation2 + $0x50] sm:$0xff] %vm777, %v761
      %784 = vst.msk [vmem:[#allocation2 + $0x60] sm:$0xff] %vm777, %v763
      %785 = vst.msk [vmem:[#allocation2 + $0x70] sm:$0xff] %vm777, %v765
      %786 = vst.msk [vmem:[#allocation2 + $0x80] sm:$0xff] %vm777, %v767
      %v787 = vld [vmem:[%s304 + $0xa] sm:$0xff]
      %v788 = vld [vmem:[%s304 + $0x12] sm:$0xff]
      %v789 = vld [vmem:[%s304 + $0x1a] sm:$0xff]
      %v790 = vld [vmem:[%s304 + $0x22] sm:$0xff]
      %v791 = vld [vmem:[%s304 + $0x2a] sm:$0xff]
      %v792 = vld [vmem:[%s304 + $0x32] sm:$0xff]
      %v793 = vld [vmem:[%s304 + $0x3a] sm:$0xff]
      %v794 = vld [vmem:[%s304 + $0x42] sm:$0xff]
      %v795 = vld [vmem:[%s304 + $0x4a] sm:$0xff]
      %805 = vrot.lane.b32.xlu0 %v787, 64
      %v806 = vpop.permute.xlu0 %805
      %807 = vrot.lane.b32.xlu0 %v788, 64
      %v808 = vpop.permute.xlu0 %807
      %809 = vrot.lane.b32.xlu0 %v789, 64
      %v810 = vpop.permute.xlu0 %809
      %811 = vrot.lane.b32.xlu0 %v790, 64
      %v812 = vpop.permute.xlu0 %811
      %813 = vrot.lane.b32.xlu0 %v791, 64
      %v814 = vpop.permute.xlu0 %813
      %815 = vrot.lane.b32.xlu0 %v792, 64
      %v816 = vpop.permute.xlu0 %815
      %817 = vrot.lane.b32.xlu0 %v793, 64
      %v818 = vpop.permute.xlu0 %817
      %819 = vrot.lane.b32.xlu0 %v794, 64
      %v820 = vpop.permute.xlu0 %819
      %821 = vrot.lane.b32.xlu0 %v795, 64
      %v822 = vpop.permute.xlu0 %821
      %vm832 = vcmask 654848
      %833 = vst.msk [vmem:[#allocation2] sm:$0xff] %vm832, %v806
      %834 = vst.msk [vmem:[#allocation2 + $0x10] sm:$0xff] %vm832, %v808
      %835 = vst.msk [vmem:[#allocation2 + $0x20] sm:$0xff] %vm832, %v810
      %836 = vst.msk [vmem:[#allocation2 + $0x30] sm:$0xff] %vm832, %v812
      %837 = vst.msk [vmem:[#allocation2 + $0x40] sm:$0xff] %vm832, %v814
      %838 = vst.msk [vmem:[#allocation2 + $0x50] sm:$0xff] %vm832, %v816
      %839 = vst.msk [vmem:[#allocation2 + $0x60] sm:$0xff] %vm832, %v818
      %840 = vst.msk [vmem:[#allocation2 + $0x70] sm:$0xff] %vm832, %v820
      %841 = vst.msk [vmem:[#allocation2 + $0x80] sm:$0xff] %vm832, %v822
      %v842 = vld [vmem:[%s356 + $0xa] sm:$0xff]
      %v843 = vld [vmem:[%s356 + $0x12] sm:$0xff]
      %v844 = vld [vmem:[%s356 + $0x1a] sm:$0xff]
      %v845 = vld [vmem:[%s356 + $0x22] sm:$0xff]
      %v846 = vld [vmem:[%s356 + $0x2a] sm:$0xff]
      %v847 = vld [vmem:[%s356 + $0x32] sm:$0xff]
      %v848 = vld [vmem:[%s356 + $0x3a] sm:$0xff]
      %v849 = vld [vmem:[%s356 + $0x42] sm:$0xff]
      %v850 = vld [vmem:[%s356 + $0x4a] sm:$0xff]
      %860 = vrot.lane.b32.xlu0 %v842, 80
      %v861 = vpop.permute.xlu0 %860
      %862 = vrot.lane.b32.xlu0 %v843, 80
      %v863 = vpop.permute.xlu0 %862
      %864 = vrot.lane.b32.xlu0 %v844, 80
      %v865 = vpop.permute.xlu0 %864
      %866 = vrot.lane.b32.xlu0 %v845, 80
      %v867 = vpop.permute.xlu0 %866
      %868 = vrot.lane.b32.xlu0 %v846, 80
      %v869 = vpop.permute.xlu0 %868
      %870 = vrot.lane.b32.xlu0 %v847, 80
      %v871 = vpop.permute.xlu0 %870
      %872 = vrot.lane.b32.xlu0 %v848, 80
      %v873 = vpop.permute.xlu0 %872
      %874 = vrot.lane.b32.xlu0 %v849, 80
      %v875 = vpop.permute.xlu0 %874
      %876 = vrot.lane.b32.xlu0 %v850, 80
      %v877 = vpop.permute.xlu0 %876
      %vm887 = vcmask 786048
      %888 = vst.msk [vmem:[#allocation2] sm:$0xff] %vm887, %v861
      %889 = vst.msk [vmem:[#allocation2 + $0x10] sm:$0xff] %vm887, %v863
      %890 = vst.msk [vmem:[#allocation2 + $0x20] sm:$0xff] %vm887, %v865
      %891 = vst.msk [vmem:[#allocation2 + $0x30] sm:$0xff] %vm887, %v867
      %892 = vst.msk [vmem:[#allocation2 + $0x40] sm:$0xff] %vm887, %v869
      %893 = vst.msk [vmem:[#allocation2 + $0x50] sm:$0xff] %vm887, %v871
      %894 = vst.msk [vmem:[#allocation2 + $0x60] sm:$0xff] %vm887, %v873
      %895 = vst.msk [vmem:[#allocation2 + $0x70] sm:$0xff] %vm887, %v875
      %896 = vst.msk [vmem:[#allocation2 + $0x80] sm:$0xff] %vm887, %v877
      %v897 = vld [vmem:[%s436 + $0x9] sm:$0xff]
      %v898 = vld [vmem:[%s436 + $0x11] sm:$0xff]
      %v899 = vld [vmem:[%s436 + $0x19] sm:$0xff]
      %v900 = vld [vmem:[%s436 + $0x21] sm:$0xff]
      %v901 = vld [vmem:[%s436 + $0x29] sm:$0xff]
      %v902 = vld [vmem:[%s436 + $0x31] sm:$0xff]
      %v903 = vld [vmem:[%s436 + $0x39] sm:$0xff]
      %v904 = vld [vmem:[%s436 + $0x41] sm:$0xff]
      %v905 = vld [vmem:[%s436 + $0x49] sm:$0xff]
      %915 = vrot.lane.b32.xlu0 %v897, 96
      %v916 = vpop.permute.xlu0 %915
      %917 = vrot.lane.b32.xlu0 %v898, 96
      %v918 = vpop.permute.xlu0 %917
      %919 = vrot.lane.b32.xlu0 %v899, 96
      %v920 = vpop.permute.xlu0 %919
      %921 = vrot.lane.b32.xlu0 %v900, 96
      %v922 = vpop.permute.xlu0 %921
      %923 = vrot.lane.b32.xlu0 %v901, 96
      %v924 = vpop.permute.xlu0 %923
      %925 = vrot.lane.b32.xlu0 %v902, 96
      %v926 = vpop.permute.xlu0 %925
      %927 = vrot.lane.b32.xlu0 %v903, 96
      %v928 = vpop.permute.xlu0 %927
      %929 = vrot.lane.b32.xlu0 %v904, 96
      %v930 = vpop.permute.xlu0 %929
      %931 = vrot.lane.b32.xlu0 %v905, 96
      %v932 = vpop.permute.xlu0 %931
      %vm942 = vcmask 917248
      %943 = vst.msk [vmem:[#allocation2] sm:$0xff] %vm942, %v916
      %944 = vst.msk [vmem:[#allocation2 + $0x10] sm:$0xff] %vm942, %v918
      %945 = vst.msk [vmem:[#allocation2 + $0x20] sm:$0xff] %vm942, %v920
      %946 = vst.msk [vmem:[#allocation2 + $0x30] sm:$0xff] %vm942, %v922
      %947 = vst.msk [vmem:[#allocation2 + $0x40] sm:$0xff] %vm942, %v924
      %948 = vst.msk [vmem:[#allocation2 + $0x50] sm:$0xff] %vm942, %v926
      %949 = vst.msk [vmem:[#allocation2 + $0x60] sm:$0xff] %vm942, %v928
      %950 = vst.msk [vmem:[#allocation2 + $0x70] sm:$0xff] %vm942, %v930
      %951 = vst.msk [vmem:[#allocation2 + $0x80] sm:$0xff] %vm942, %v932
      %v952 = vld [vmem:[%s396 + $0xa] sm:$0xff]
      %v953 = vld [vmem:[%s396 + $0x12] sm:$0xff]
      %v954 = vld [vmem:[%s396 + $0x1a] sm:$0xff]
      %v955 = vld [vmem:[%s396 + $0x22] sm:$0xff]
      %v956 = vld [vmem:[%s396 + $0x2a] sm:$0xff]
      %v957 = vld [vmem:[%s396 + $0x32] sm:$0xff]
      %v958 = vld [vmem:[%s396 + $0x3a] sm:$0xff]
      %v959 = vld [vmem:[%s396 + $0x42] sm:$0xff]
      %v960 = vld [vmem:[%s396 + $0x4a] sm:$0xff]
      %970 = vrot.lane.b32.xlu0 %v952, 112
      %v971 = vpop.permute.xlu0 %970
      %972 = vrot.lane.b32.xlu0 %v953, 112
      %v973 = vpop.permute.xlu0 %972
      %974 = vrot.lane.b32.xlu0 %v954, 112
      %v975 = vpop.permute.xlu0 %974
      %976 = vrot.lane.b32.xlu0 %v955, 112
      %v977 = vpop.permute.xlu0 %976
      %978 = vrot.lane.b32.xlu0 %v956, 112
      %v979 = vpop.permute.xlu0 %978
      %980 = vrot.lane.b32.xlu0 %v957, 112
      %v981 = vpop.permute.xlu0 %980
      %982 = vrot.lane.b32.xlu0 %v958, 112
      %v983 = vpop.permute.xlu0 %982
      %984 = vrot.lane.b32.xlu0 %v959, 112
      %v985 = vpop.permute.xlu0 %984
      %986 = vrot.lane.b32.xlu0 %v960, 112
      %v987 = vpop.permute.xlu0 %986
      %vm997 = vcmask 1048448
      %998 = vst.msk [vmem:[#allocation2] sm:$0xff] %vm997, %v971
      %999 = vst.msk [vmem:[#allocation2 + $0x10] sm:$0xff] %vm997, %v973
      %1000 = vst.msk [vmem:[#allocation2 + $0x20] sm:$0xff] %vm997, %v975
      %1001 = vst.msk [vmem:[#allocation2 + $0x30] sm:$0xff] %vm997, %v977
      %1002 = vst.msk [vmem:[#allocation2 + $0x40] sm:$0xff] %vm997, %v979
      %1003 = vst.msk [vmem:[#allocation2 + $0x50] sm:$0xff] %vm997, %v981
      %1004 = vst.msk [vmem:[#allocation2 + $0x60] sm:$0xff] %vm997, %v983
      %1005 = vst.msk [vmem:[#allocation2 + $0x70] sm:$0xff] %vm997, %v985
      %1006 = vst.msk [vmem:[#allocation2 + $0x80] sm:$0xff] %vm997, %v987
      %v1007 = vld [vmem:[%s436 + $0xa] sm:$0xff]
      %v1008 = vld [vmem:[%s436 + $0x12] sm:$0xff]
      %v1009 = vld [vmem:[%s436 + $0x1a] sm:$0xff]
      %v1010 = vld [vmem:[%s436 + $0x22] sm:$0xff]
      %v1011 = vld [vmem:[%s436 + $0x2a] sm:$0xff]
      %v1012 = vld [vmem:[%s436 + $0x32] sm:$0xff]
      %v1013 = vld [vmem:[%s436 + $0x3a] sm:$0xff]
      %v1014 = vld [vmem:[%s436 + $0x42] sm:$0xff]
      %v1015 = vld [vmem:[%s436 + $0x4a] sm:$0xff]
      %1016 = vst.msk [vmem:[#allocation2 + $0x8] sm:$0xff] %vm311, %v1007
      %1017 = vst.msk [vmem:[#allocation2 + $0x18] sm:$0xff] %vm311, %v1008
      %1018 = vst.msk [vmem:[#allocation2 + $0x28] sm:$0xff] %vm311, %v1009
      %1019 = vst.msk [vmem:[#allocation2 + $0x38] sm:$0xff] %vm311, %v1010
      %1020 = vst.msk [vmem:[#allocation2 + $0x48] sm:$0xff] %vm311, %v1011
      %1021 = vst.msk [vmem:[#allocation2 + $0x58] sm:$0xff] %vm311, %v1012
      %1022 = vst.msk [vmem:[#allocation2 + $0x68] sm:$0xff] %vm311, %v1013
      %1023 = vst.msk [vmem:[#allocation2 + $0x78] sm:$0xff] %vm311, %v1014
      %1024 = vst.msk [vmem:[#allocation2 + $0x88] sm:$0xff] %vm311, %v1015
      %v1025 = vld [vmem:[#allocation2] sm:$0xff]
      %v1026 = vld [vmem:[#allocation2 + $0x8] sm:$0xff]
      %v1027 = vld [vmem:[#allocation2 + $0x10] sm:$0xff]
      %v1028 = vld [vmem:[#allocation2 + $0x18] sm:$0xff]
      %v1029 = vld [vmem:[#allocation2 + $0x20] sm:$0xff]
      %v1030 = vld [vmem:[#allocation2 + $0x28] sm:$0xff]
      %v1031 = vld [vmem:[#allocation2 + $0x30] sm:$0xff]
      %v1032 = vld [vmem:[#allocation2 + $0x38] sm:$0xff]
      %v1033 = vld [vmem:[#allocation2 + $0x40] sm:$0xff]
      %v1034 = vld [vmem:[#allocation2 + $0x48] sm:$0xff]
      %v1035 = vld [vmem:[#allocation2 + $0x50] sm:$0xff]
      %v1036 = vld [vmem:[#allocation2 + $0x58] sm:$0xff]
      %v1037 = vld [vmem:[#allocation2 + $0x60] sm:$0xff]
      %v1038 = vld [vmem:[#allocation2 + $0x68] sm:$0xff]
      %v1039 = vld [vmem:[#allocation2 + $0x70] sm:$0xff]
      %v1040 = vld [vmem:[#allocation2 + $0x78] sm:$0xff]
      %v1041 = vld [vmem:[#allocation2 + $0x80] sm:$0xff]
      %v1042 = vld [vmem:[#allocation2 + $0x88] sm:$0xff]
      %v1044 = vsel %vm311, %v1026, 0
      %v1047 = vsel %vm311, %v1028, 0
      %v1050 = vsel %vm311, %v1030, 0
      %v1053 = vsel %vm311, %v1032, 0
      %v1056 = vsel %vm311, %v1034, 0
      %v1059 = vsel %vm311, %v1036, 0
      %v1062 = vsel %vm311, %v1038, 0
      %v1065 = vsel %vm311, %v1040, 0
      %v1068 = vsel %vm311, %v1042, 0
      %1070 = vmatpush.msra.mxu0 %v601
      %1071 = vmatpush.msra.mxu0 %v600
      %1072 = vmatpush.msra.mxu0 %v599
      %1073 = vmatpush.msra.mxu0 %v598
      %1074 = vmatpush.msra.mxu0 %v597
      %1075 = vmatpush.msra.mxu0 %v596
      %1076 = vmatpush.msra.mxu0 %v595
      %1077 = vmatpush.msra.mxu0 %v594
      %1078 = vmatpush.msra.mxu0 %v593
      %1079 = vmatpush.msra.mxu0 %v592
      %1080 = vmatpush.msra.mxu0 %v591
      %1081 = vmatpush.msra.mxu0 %v590
      %1082 = vmatpush.msra.mxu0 %v589
      %1083 = vmatpush.msra.mxu0 %v588
      %1084 = vmatpush.msra.mxu0 %v587
      %1085 = vmatpush.msra.mxu0 %v586
      %1086 = vmatmul.f32.gmra.mxu0 %v1025
      %v1087 = vpop.f32.mrf.mxu0
      %v1088 = vadd.f32 0.0, %v1087
      %1089 = vmatmul.f32.gmra.mxu0 %v1027
      %v1090 = vpop.f32.mrf.mxu0
      %v1091 = vadd.f32 0.0, %v1090
      %1092 = vmatmul.f32.gmra.mxu0 %v1029
      %v1093 = vpop.f32.mrf.mxu0
      %v1094 = vadd.f32 0.0, %v1093
      %1095 = vmatmul.f32.gmra.mxu0 %v1031
      %v1096 = vpop.f32.mrf.mxu0
      %v1097 = vadd.f32 0.0, %v1096
      %1098 = vmatmul.f32.gmra.mxu0 %v1033
      %v1099 = vpop.f32.mrf.mxu0
      %v1100 = vadd.f32 0.0, %v1099
      %1101 = vmatmul.f32.gmra.mxu0 %v1035
      %v1102 = vpop.f32.mrf.mxu0
      %v1103 = vadd.f32 0.0, %v1102
      %1104 = vmatmul.f32.gmra.mxu0 %v1037
      %v1105 = vpop.f32.mrf.mxu0
      %v1106 = vadd.f32 0.0, %v1105
      %1107 = vmatmul.f32.gmra.mxu0 %v1039
      %v1108 = vpop.f32.mrf.mxu0
      %v1109 = vadd.f32 0.0, %v1108
      %1110 = vmatmul.f32.gmra.mxu0 %v1041
      %v1111 = vpop.f32.mrf.mxu0
      %v1112 = vadd.f32 0.0, %v1111
      %1113 = vdwg.mxu0
      %1114 = vmatpush.msra.mxu0 0.0
      %1115 = vmatpush.msra.mxu0 0.0
      %1116 = vmatpush.msra.mxu0 0.0
      %1117 = vmatpush.msra.mxu0 0.0
      %1118 = vmatpush.msra.mxu0 0.0
      %1119 = vmatpush.msra.mxu0 0.0
      %1120 = vmatpush.msra.mxu0 0.0
      %1121 = vmatpush.msra.mxu0 0.0
      %1122 = vmatpush.msra.mxu0 0.0
      %1123 = vmatpush.msra.mxu0 0.0
      %1124 = vmatpush.msra.mxu0 0.0
      %1125 = vmatpush.msra.mxu0 0.0
      %1126 = vmatpush.msra.mxu0 0.0
      %1127 = vmatpush.msra.mxu0 0.0
      %1128 = vmatpush.msra.mxu0 %v603
      %1129 = vmatpush.msra.mxu0 %v602
      %1130 = vmatmul.f32.gmra.mxu0 %v1044
      %v1131 = vpop.f32.mrf.mxu0
      %v1132 = vadd.f32 %v1088, %v1131
      %1133 = vmatmul.f32.gmra.mxu0 %v1047
      %v1134 = vpop.f32.mrf.mxu0
      %v1135 = vadd.f32 %v1091, %v1134
      %1136 = vmatmul.f32.gmra.mxu0 %v1050
      %v1137 = vpop.f32.mrf.mxu0
      %v1138 = vadd.f32 %v1094, %v1137
      %1139 = vmatmul.f32.gmra.mxu0 %v1053
      %v1140 = vpop.f32.mrf.mxu0
      %v1141 = vadd.f32 %v1097, %v1140
      %1142 = vmatmul.f32.gmra.mxu0 %v1056
      %v1143 = vpop.f32.mrf.mxu0
      %v1144 = vadd.f32 %v1100, %v1143
      %1145 = vmatmul.f32.gmra.mxu0 %v1059
      %v1146 = vpop.f32.mrf.mxu0
      %v1147 = vadd.f32 %v1103, %v1146
      %1148 = vmatmul.f32.gmra.mxu0 %v1062
      %v1149 = vpop.f32.mrf.mxu0
      %v1150 = vadd.f32 %v1106, %v1149
      %1151 = vmatmul.f32.gmra.mxu0 %v1065
      %v1152 = vpop.f32.mrf.mxu0
      %v1153 = vadd.f32 %v1109, %v1152
      %1154 = vmatmul.f32.gmra.mxu0 %v1068
      %v1155 = vpop.f32.mrf.mxu0
      %v1156 = vadd.f32 %v1112, %v1155
      %1157 = vdwg.mxu0
      %v1158 = vmax.f32 %v1132, 0.0
      %v1159 = vmax.f32 %v1135, 0.0
      %v1160 = vmax.f32 %v1138, 0.0
      %v1161 = vmax.f32 %v1141, 0.0
      %v1162 = vmax.f32 %v1144, 0.0
      %v1163 = vmax.f32 %v1147, 0.0
      %v1164 = vmax.f32 %v1150, 0.0
      %v1165 = vmax.f32 %v1153, 0.0
      %v1166 = vmax.f32 %v1156, 0.0
      %v1167 = vlaneseq
      %v1168 = vshrl.u32 %v1167, 7
      %v1169 = vadd.s32 %v1168, 8
      %v1170 = vadd.s32 %v1168, 16
      %v1171 = vadd.s32 %v1168, 24
      %v1172 = vadd.s32 %v1168, 32
      %v1173 = vadd.s32 %v1168, 40
      %v1174 = vadd.s32 %v1168, 48
      %v1175 = vadd.s32 %v1168, 56
      %v1176 = vadd.s32 %v1168, 64
      %vm1177 = vcmp.lt.s32.totalorder %v1168, 0
      %v1178 = vsub.s32 0, %v1168
      %v1179 = vsel %vm1177, %v1178, %v1168
      %v1180 = vand.u32 %v1179, 65535
      %v1181 = vshrl.u32 %v1179, 16
      %v1183 = vmul.u32 %v1180, 14564
      %v1184 = vmul.u32 %v1180, 58254
      %v1185 = vmul.u32 %v1181, 14564
      %v1186 = vmul.u32 %v1181, 58254
      %v1187 = vshll.u32 %v1184, 16
      %v1188 = vshrl.u32 %v1184, 16
      %v1189 = vshll.u32 %v1185, 16
      %v1190 = vshrl.u32 %v1185, 16
      %vm1191 = vc.u32 %v1183, %v1187
      %v1192 = vsel %vm1191, 1, 0
      %v1193 = vadd.s32 %v1183, %v1187
      %v1194 = vadd.s32 %v1186, %v1192
      %vm1195 = vc.u32 %v1193, %v1189
      %v1196 = vsel %vm1195, 1, 0
      %v1197 = vadd.s32 %v1193, %v1189
      %v1198 = vadd.s32 %v1194, %v1196
      %v1199 = vadd.s32 %v1198, %v1188
      %v1200 = vadd.s32 %v1199, %v1190
      %v1201 = vshrl.u32 %v1200, 3
      %v1202 = vmul.u32 %v1201, 9
      %v1203 = vsub.s32 %v1179, %v1202
      %v1204 = vsub.s32 0, %v1203
      %v1205 = vsel %vm1177, %v1204, %v1203
      %vm1206 = vcmp.lt.s32.totalorder %v1169, 0
      %v1207 = vsub.s32 0, %v1169
      %v1208 = vsel %vm1206, %v1207, %v1169
      %v1209 = vand.u32 %v1208, 65535
      %v1210 = vshrl.u32 %v1208, 16
      %v1212 = vmul.u32 %v1209, 14564
      %v1213 = vmul.u32 %v1209, 58254
      %v1214 = vmul.u32 %v1210, 14564
      %v1215 = vmul.u32 %v1210, 58254
      %v1216 = vshll.u32 %v1213, 16
      %v1217 = vshrl.u32 %v1213, 16
      %v1218 = vshll.u32 %v1214, 16
      %v1219 = vshrl.u32 %v1214, 16
      %vm1220 = vc.u32 %v1212, %v1216
      %v1221 = vsel %vm1220, 1, 0
      %v1222 = vadd.s32 %v1212, %v1216
      %v1223 = vadd.s32 %v1215, %v1221
      %vm1224 = vc.u32 %v1222, %v1218
      %v1225 = vsel %vm1224, 1, 0
      %v1226 = vadd.s32 %v1222, %v1218
      %v1227 = vadd.s32 %v1223, %v1225
      %v1228 = vadd.s32 %v1227, %v1217
      %v1229 = vadd.s32 %v1228, %v1219
      %v1230 = vshrl.u32 %v1229, 3
      %v1231 = vmul.u32 %v1230, 9
      %v1232 = vsub.s32 %v1208, %v1231
      %v1233 = vsub.s32 0, %v1232
      %v1234 = vsel %vm1206, %v1233, %v1232
      %vm1235 = vcmp.lt.s32.totalorder %v1170, 0
      %v1236 = vsub.s32 0, %v1170
      %v1237 = vsel %vm1235, %v1236, %v1170
      %v1238 = vand.u32 %v1237, 65535
      %v1239 = vshrl.u32 %v1237, 16
      %v1241 = vmul.u32 %v1238, 14564
      %v1242 = vmul.u32 %v1238, 58254
      %v1243 = vmul.u32 %v1239, 14564
      %v1244 = vmul.u32 %v1239, 58254
      %v1245 = vshll.u32 %v1242, 16
      %v1246 = vshrl.u32 %v1242, 16
      %v1247 = vshll.u32 %v1243, 16
      %v1248 = vshrl.u32 %v1243, 16
      %vm1249 = vc.u32 %v1241, %v1245
      %v1250 = vsel %vm1249, 1, 0
      %v1251 = vadd.s32 %v1241, %v1245
      %v1252 = vadd.s32 %v1244, %v1250
      %vm1253 = vc.u32 %v1251, %v1247
      %v1254 = vsel %vm1253, 1, 0
      %v1255 = vadd.s32 %v1251, %v1247
      %v1256 = vadd.s32 %v1252, %v1254
      %v1257 = vadd.s32 %v1256, %v1246
      %v1258 = vadd.s32 %v1257, %v1248
      %v1259 = vshrl.u32 %v1258, 3
      %v1260 = vmul.u32 %v1259, 9
      %v1261 = vsub.s32 %v1237, %v1260
      %v1262 = vsub.s32 0, %v1261
      %v1263 = vsel %vm1235, %v1262, %v1261
      %vm1264 = vcmp.lt.s32.totalorder %v1171, 0
      %v1265 = vsub.s32 0, %v1171
      %v1266 = vsel %vm1264, %v1265, %v1171
      %v1267 = vand.u32 %v1266, 65535
      %v1268 = vshrl.u32 %v1266, 16
      %v1270 = vmul.u32 %v1267, 14564
      %v1271 = vmul.u32 %v1267, 58254
      %v1272 = vmul.u32 %v1268, 14564
      %v1273 = vmul.u32 %v1268, 58254
      %v1274 = vshll.u32 %v1271, 16
      %v1275 = vshrl.u32 %v1271, 16
      %v1276 = vshll.u32 %v1272, 16
      %v1277 = vshrl.u32 %v1272, 16
      %vm1278 = vc.u32 %v1270, %v1274
      %v1279 = vsel %vm1278, 1, 0
      %v1280 = vadd.s32 %v1270, %v1274
      %v1281 = vadd.s32 %v1273, %v1279
      %vm1282 = vc.u32 %v1280, %v1276
      %v1283 = vsel %vm1282, 1, 0
      %v1284 = vadd.s32 %v1280, %v1276
      %v1285 = vadd.s32 %v1281, %v1283
      %v1286 = vadd.s32 %v1285, %v1275
      %v1287 = vadd.s32 %v1286, %v1277
      %v1288 = vshrl.u32 %v1287, 3
      %v1289 = vmul.u32 %v1288, 9
      %v1290 = vsub.s32 %v1266, %v1289
      %v1291 = vsub.s32 0, %v1290
      %v1292 = vsel %vm1264, %v1291, %v1290
      %vm1293 = vcmp.lt.s32.totalorder %v1172, 0
      %v1294 = vsub.s32 0, %v1172
      %v1295 = vsel %vm1293, %v1294, %v1172
      %v1296 = vand.u32 %v1295, 65535
      %v1297 = vshrl.u32 %v1295, 16
      %v1299 = vmul.u32 %v1296, 14564
      %v1300 = vmul.u32 %v1296, 58254
      %v1301 = vmul.u32 %v1297, 14564
      %v1302 = vmul.u32 %v1297, 58254
      %v1303 = vshll.u32 %v1300, 16
      %v1304 = vshrl.u32 %v1300, 16
      %v1305 = vshll.u32 %v1301, 16
      %v1306 = vshrl.u32 %v1301, 16
      %vm1307 = vc.u32 %v1299, %v1303
      %v1308 = vsel %vm1307, 1, 0
      %v1309 = vadd.s32 %v1299, %v1303
      %v1310 = vadd.s32 %v1302, %v1308
      %vm1311 = vc.u32 %v1309, %v1305
      %v1312 = vsel %vm1311, 1, 0
      %v1313 = vadd.s32 %v1309, %v1305
      %v1314 = vadd.s32 %v1310, %v1312
      %v1315 = vadd.s32 %v1314, %v1304
      %v1316 = vadd.s32 %v1315, %v1306
      %v1317 = vshrl.u32 %v1316, 3
      %v1318 = vmul.u32 %v1317, 9
      %v1319 = vsub.s32 %v1295, %v1318
      %v1320 = vsub.s32 0, %v1319
      %v1321 = vsel %vm1293, %v1320, %v1319
      %vm1322 = vcmp.lt.s32.totalorder %v1173, 0
      %v1323 = vsub.s32 0, %v1173
      %v1324 = vsel %vm1322, %v1323, %v1173
      %v1325 = vand.u32 %v1324, 65535
      %v1326 = vshrl.u32 %v1324, 16
      %v1328 = vmul.u32 %v1325, 14564
      %v1329 = vmul.u32 %v1325, 58254
      %v1330 = vmul.u32 %v1326, 14564
      %v1331 = vmul.u32 %v1326, 58254
      %v1332 = vshll.u32 %v1329, 16
      %v1333 = vshrl.u32 %v1329, 16
      %v1334 = vshll.u32 %v1330, 16
      %v1335 = vshrl.u32 %v1330, 16
      %vm1336 = vc.u32 %v1328, %v1332
      %v1337 = vsel %vm1336, 1, 0
      %v1338 = vadd.s32 %v1328, %v1332
      %v1339 = vadd.s32 %v1331, %v1337
      %vm1340 = vc.u32 %v1338, %v1334
      %v1341 = vsel %vm1340, 1, 0
      %v1342 = vadd.s32 %v1338, %v1334
      %v1343 = vadd.s32 %v1339, %v1341
      %v1344 = vadd.s32 %v1343, %v1333
      %v1345 = vadd.s32 %v1344, %v1335
      %v1346 = vshrl.u32 %v1345, 3
      %v1347 = vmul.u32 %v1346, 9
      %v1348 = vsub.s32 %v1324, %v1347
      %v1349 = vsub.s32 0, %v1348
      %v1350 = vsel %vm1322, %v1349, %v1348
      %vm1351 = vcmp.lt.s32.totalorder %v1174, 0
      %v1352 = vsub.s32 0, %v1174
      %v1353 = vsel %vm1351, %v1352, %v1174
      %v1354 = vand.u32 %v1353, 65535
      %v1355 = vshrl.u32 %v1353, 16
      %v1357 = vmul.u32 %v1354, 14564
      %v1358 = vmul.u32 %v1354, 58254
      %v1359 = vmul.u32 %v1355, 14564
      %v1360 = vmul.u32 %v1355, 58254
      %v1361 = vshll.u32 %v1358, 16
      %v1362 = vshrl.u32 %v1358, 16
      %v1363 = vshll.u32 %v1359, 16
      %v1364 = vshrl.u32 %v1359, 16
      %vm1365 = vc.u32 %v1357, %v1361
      %v1366 = vsel %vm1365, 1, 0
      %v1367 = vadd.s32 %v1357, %v1361
      %v1368 = vadd.s32 %v1360, %v1366
      %vm1369 = vc.u32 %v1367, %v1363
      %v1370 = vsel %vm1369, 1, 0
      %v1371 = vadd.s32 %v1367, %v1363
      %v1372 = vadd.s32 %v1368, %v1370
      %v1373 = vadd.s32 %v1372, %v1362
      %v1374 = vadd.s32 %v1373, %v1364
      %v1375 = vshrl.u32 %v1374, 3
      %v1376 = vmul.u32 %v1375, 9
      %v1377 = vsub.s32 %v1353, %v1376
      %v1378 = vsub.s32 0, %v1377
      %v1379 = vsel %vm1351, %v1378, %v1377
      %vm1380 = vcmp.lt.s32.totalorder %v1175, 0
      %v1381 = vsub.s32 0, %v1175
      %v1382 = vsel %vm1380, %v1381, %v1175
      %v1383 = vand.u32 %v1382, 65535
      %v1384 = vshrl.u32 %v1382, 16
      %v1386 = vmul.u32 %v1383, 14564
      %v1387 = vmul.u32 %v1383, 58254
      %v1388 = vmul.u32 %v1384, 14564
      %v1389 = vmul.u32 %v1384, 58254
      %v1390 = vshll.u32 %v1387, 16
      %v1391 = vshrl.u32 %v1387, 16
      %v1392 = vshll.u32 %v1388, 16
      %v1393 = vshrl.u32 %v1388, 16
      %vm1394 = vc.u32 %v1386, %v1390
      %v1395 = vsel %vm1394, 1, 0
      %v1396 = vadd.s32 %v1386, %v1390
      %v1397 = vadd.s32 %v1389, %v1395
      %vm1398 = vc.u32 %v1396, %v1392
      %v1399 = vsel %vm1398, 1, 0
      %v1400 = vadd.s32 %v1396, %v1392
      %v1401 = vadd.s32 %v1397, %v1399
      %v1402 = vadd.s32 %v1401, %v1391
      %v1403 = vadd.s32 %v1402, %v1393
      %v1404 = vshrl.u32 %v1403, 3
      %v1405 = vmul.u32 %v1404, 9
      %v1406 = vsub.s32 %v1382, %v1405
      %v1407 = vsub.s32 0, %v1406
      %v1408 = vsel %vm1380, %v1407, %v1406
      %vm1409 = vcmp.lt.s32.totalorder %v1176, 0
      %v1410 = vsub.s32 0, %v1176
      %v1411 = vsel %vm1409, %v1410, %v1176
      %v1412 = vand.u32 %v1411, 65535
      %v1413 = vshrl.u32 %v1411, 16
      %v1415 = vmul.u32 %v1412, 14564
      %v1416 = vmul.u32 %v1412, 58254
      %v1417 = vmul.u32 %v1413, 14564
      %v1418 = vmul.u32 %v1413, 58254
      %v1419 = vshll.u32 %v1416, 16
      %v1420 = vshrl.u32 %v1416, 16
      %v1421 = vshll.u32 %v1417, 16
      %v1422 = vshrl.u32 %v1417, 16
      %vm1423 = vc.u32 %v1415, %v1419
      %v1424 = vsel %vm1423, 1, 0
      %v1425 = vadd.s32 %v1415, %v1419
      %v1426 = vadd.s32 %v1418, %v1424
      %vm1427 = vc.u32 %v1425, %v1421
      %v1428 = vsel %vm1427, 1, 0
      %v1429 = vadd.s32 %v1425, %v1421
      %v1430 = vadd.s32 %v1426, %v1428
      %v1431 = vadd.s32 %v1430, %v1420
      %v1432 = vadd.s32 %v1431, %v1422
      %v1433 = vshrl.u32 %v1432, 3
      %v1434 = vmul.u32 %v1433, 9
      %v1435 = vsub.s32 %v1411, %v1434
      %v1436 = vsub.s32 0, %v1435
      %v1437 = vsel %vm1409, %v1436, %v1435
      %vm1438 = vcmp.ne.s32.totalorder %v1205, 0
      %vm1439 = vcmp.ne.s32.totalorder %v1234, 0
      %vm1440 = vcmp.ne.s32.totalorder %v1263, 0
      %vm1441 = vcmp.ne.s32.totalorder %v1292, 0
      %vm1442 = vcmp.ne.s32.totalorder %v1321, 0
      %vm1443 = vcmp.ne.s32.totalorder %v1350, 0
      %vm1444 = vcmp.ne.s32.totalorder %v1379, 0
      %vm1445 = vcmp.ne.s32.totalorder %v1408, 0
      %vm1446 = vcmp.ne.s32.totalorder %v1437, 0
      %vm1447 = vcmp.lt.s32.totalorder %v1205, 0
      %vm1448 = vcmp.lt.s32.totalorder %v1234, 0
      %vm1449 = vcmp.lt.s32.totalorder %v1263, 0
      %vm1450 = vcmp.lt.s32.totalorder %v1292, 0
      %vm1451 = vcmp.lt.s32.totalorder %v1321, 0
      %vm1452 = vcmp.lt.s32.totalorder %v1350, 0
      %vm1453 = vcmp.lt.s32.totalorder %v1379, 0
      %vm1454 = vcmp.lt.s32.totalorder %v1408, 0
      %vm1455 = vcmp.lt.s32.totalorder %v1437, 0
      %vm1456 = vmand %vm1447, %vm1438
      %vm1457 = vmand %vm1448, %vm1439
      %vm1458 = vmand %vm1449, %vm1440
      %vm1459 = vmand %vm1450, %vm1441
      %vm1460 = vmand %vm1451, %vm1442
      %vm1461 = vmand %vm1452, %vm1443
      %vm1462 = vmand %vm1453, %vm1444
      %vm1463 = vmand %vm1454, %vm1445
      %vm1464 = vmand %vm1455, %vm1446
      %v1465 = vadd.s32 %v1205, 9
      %v1466 = vadd.s32 %v1234, 9
      %v1467 = vadd.s32 %v1263, 9
      %v1468 = vadd.s32 %v1292, 9
      %v1469 = vadd.s32 %v1321, 9
      %v1470 = vadd.s32 %v1350, 9
      %v1471 = vadd.s32 %v1379, 9
      %v1472 = vadd.s32 %v1408, 9
      %v1473 = vadd.s32 %v1437, 9
      %v1474 = vsel %vm1456, %v1465, %v1205
      %v1475 = vsel %vm1457, %v1466, %v1234
      %v1476 = vsel %vm1458, %v1467, %v1263
      %v1477 = vsel %vm1459, %v1468, %v1292
      %v1478 = vsel %vm1460, %v1469, %v1321
      %v1479 = vsel %vm1461, %v1470, %v1350
      %v1480 = vsel %vm1462, %v1471, %v1379
      %v1481 = vsel %vm1463, %v1472, %v1408
      %v1482 = vsel %vm1464, %v1473, %v1437
      %vm1483 = vcmp.eq.s32.totalorder %v1474, 8
      %vm1484 = vcmp.eq.s32.totalorder %v1475, 8
      %vm1485 = vcmp.eq.s32.totalorder %v1476, 8
      %vm1486 = vcmp.eq.s32.totalorder %v1477, 8
      %vm1487 = vcmp.eq.s32.totalorder %v1478, 8
      %vm1488 = vcmp.eq.s32.totalorder %v1479, 8
      %vm1489 = vcmp.eq.s32.totalorder %v1480, 8
      %vm1490 = vcmp.eq.s32.totalorder %v1481, 8
      %vm1491 = vcmp.eq.s32.totalorder %v1482, 8
      %v1492 = vsel %vm1483, 1, 0
      %v1493 = vsel %vm1484, 1, 0
      %v1494 = vsel %vm1485, 1, 0
      %v1495 = vsel %vm1486, 1, 0
      %v1496 = vsel %vm1487, 1, 0
      %v1497 = vsel %vm1488, 1, 0
      %v1498 = vsel %vm1489, 1, 0
      %v1499 = vsel %vm1490, 1, 0
      %v1500 = vsel %vm1491, 1, 0
      %vm1501 = vcmp.eq.s32.totalorder %v1492, 1
      %vm1502 = vcmp.eq.s32.totalorder %v1493, 1
      %vm1503 = vcmp.eq.s32.totalorder %v1494, 1
      %vm1504 = vcmp.eq.s32.totalorder %v1495, 1
      %vm1505 = vcmp.eq.s32.totalorder %v1496, 1
      %vm1506 = vcmp.eq.s32.totalorder %v1497, 1
      %vm1507 = vcmp.eq.s32.totalorder %v1498, 1
      %vm1508 = vcmp.eq.s32.totalorder %v1499, 1
      %vm1509 = vcmp.eq.s32.totalorder %v1500, 1
      %v1510 = vsel %vm1501, 0.0, %v1158
      %v1511 = vsel %vm1502, 0.0, %v1159
      %v1512 = vsel %vm1503, 0.0, %v1160
      %v1513 = vsel %vm1504, 0.0, %v1161
      %v1514 = vsel %vm1505, 0.0, %v1162
      %v1515 = vsel %vm1506, 0.0, %v1163
      %v1516 = vsel %vm1507, 0.0, %v1164
      %v1517 = vsel %vm1508, 0.0, %v1165
      %v1518 = vsel %vm1509, 0.0, %v1166
      %1519 = vst.msk [vmem:[#allocation3 + $0xa] sm:$0xff] %vm311, %v1510
      %1520 = vst.msk [vmem:[#allocation3 + $0x12] sm:$0xff] %vm311, %v1511
      %1521 = vst.msk [vmem:[#allocation3 + $0x1a] sm:$0xff] %vm311, %v1512
      %1522 = vst.msk [vmem:[#allocation3 + $0x22] sm:$0xff] %vm311, %v1513
      %1523 = vst.msk [vmem:[#allocation3 + $0x2a] sm:$0xff] %vm311, %v1514
      %1524 = vst.msk [vmem:[#allocation3 + $0x32] sm:$0xff] %vm311, %v1515
      %1525 = vst.msk [vmem:[#allocation3 + $0x3a] sm:$0xff] %vm311, %v1516
      %1526 = vst.msk [vmem:[#allocation3 + $0x42] sm:$0xff] %vm311, %v1517
      %1527 = vst.msk [vmem:[#allocation3 + $0x4a] sm:$0xff] %vm311, %v1518
      %v1528 = vld [vmem:[#allocation3] sm:$0xff]
      %v1529 = vld [vmem:[#allocation3 + $0x8] sm:$0xff]
      %v1530 = vld [vmem:[#allocation3 + $0x10] sm:$0xff]
      %v1531 = vld [vmem:[#allocation3 + $0x18] sm:$0xff]
      %v1532 = vld [vmem:[#allocation3 + $0x20] sm:$0xff]
      %v1533 = vld [vmem:[#allocation3 + $0x28] sm:$0xff]
      %v1534 = vld [vmem:[#allocation3 + $0x30] sm:$0xff]
      %v1535 = vld [vmem:[#allocation3 + $0x38] sm:$0xff]
      %v1536 = vld [vmem:[#allocation3 + $0x40] sm:$0xff]
      %1537 = vst.msk [vmem:[#allocation2] sm:$0xff] %vm311, %v1528
      %1538 = vst.msk [vmem:[#allocation2 + $0x10] sm:$0xff] %vm311, %v1529
      %1539 = vst.msk [vmem:[#allocation2 + $0x20] sm:$0xff] %vm311, %v1530
      %1540 = vst.msk [vmem:[#allocation2 + $0x30] sm:$0xff] %vm311, %v1531
      %1541 = vst.msk [vmem:[#allocation2 + $0x40] sm:$0xff] %vm311, %v1532
      %1542 = vst.msk [vmem:[#allocation2 + $0x50] sm:$0xff] %vm311, %v1533
      %1543 = vst.msk [vmem:[#allocation2 + $0x60] sm:$0xff] %vm311, %v1534
      %1544 = vst.msk [vmem:[#allocation2 + $0x70] sm:$0xff] %vm311, %v1535
      %1545 = vst.msk [vmem:[#allocation2 + $0x80] sm:$0xff] %vm311, %v1536
      %v1546 = vld [vmem:[#allocation3 + $0x1] sm:$0xff]
      %v1547 = vld [vmem:[#allocation3 + $0x9] sm:$0xff]
      %v1548 = vld [vmem:[#allocation3 + $0x11] sm:$0xff]
      %v1549 = vld [vmem:[#allocation3 + $0x19] sm:$0xff]
      %v1550 = vld [vmem:[#allocation3 + $0x21] sm:$0xff]
      %v1551 = vld [vmem:[#allocation3 + $0x29] sm:$0xff]
      %v1552 = vld [vmem:[#allocation3 + $0x31] sm:$0xff]
      %v1553 = vld [vmem:[#allocation3 + $0x39] sm:$0xff]
      %v1554 = vld [vmem:[#allocation3 + $0x41] sm:$0xff]
      %1564 = vrot.lane.b32.xlu0 %v1546, 16
      %v1565 = vpop.permute.xlu0 %1564
      %1566 = vrot.lane.b32.xlu0 %v1547, 16
      %v1567 = vpop.permute.xlu0 %1566
      %1568 = vrot.lane.b32.xlu0 %v1548, 16
      %v1569 = vpop.permute.xlu0 %1568
      %1570 = vrot.lane.b32.xlu0 %v1549, 16
      %v1571 = vpop.permute.xlu0 %1570
      %1572 = vrot.lane.b32.xlu0 %v1550, 16
      %v1573 = vpop.permute.xlu0 %1572
      %1574 = vrot.lane.b32.xlu0 %v1551, 16
      %v1575 = vpop.permute.xlu0 %1574
      %1576 = vrot.lane.b32.xlu0 %v1552, 16
      %v1577 = vpop.permute.xlu0 %1576
      %1578 = vrot.lane.b32.xlu0 %v1553, 16
      %v1579 = vpop.permute.xlu0 %1578
      %1580 = vrot.lane.b32.xlu0 %v1554, 16
      %v1581 = vpop.permute.xlu0 %1580
      %1591 = vst.msk [vmem:[#allocation2] sm:$0xff] %vm667, %v1565
      %1592 = vst.msk [vmem:[#allocation2 + $0x10] sm:$0xff] %vm667, %v1567
      %1593 = vst.msk [vmem:[#allocation2 + $0x20] sm:$0xff] %vm667, %v1569
      %1594 = vst.msk [vmem:[#allocation2 + $0x30] sm:$0xff] %vm667, %v1571
      %1595 = vst.msk [vmem:[#allocation2 + $0x40] sm:$0xff] %vm667, %v1573
      %1596 = vst.msk [vmem:[#allocation2 + $0x50] sm:$0xff] %vm667, %v1575
      %1597 = vst.msk [vmem:[#allocation2 + $0x60] sm:$0xff] %vm667, %v1577
      %1598 = vst.msk [vmem:[#allocation2 + $0x70] sm:$0xff] %vm667, %v1579
      %1599 = vst.msk [vmem:[#allocation2 + $0x80] sm:$0xff] %vm667, %v1581
      %v1600 = vld [vmem:[#allocation3 + $0x2] sm:$0xff]
      %v1601 = vld [vmem:[#allocation3 + $0xa] sm:$0xff]
      %v1602 = vld [vmem:[#allocation3 + $0x12] sm:$0xff]
      %v1603 = vld [vmem:[#allocation3 + $0x1a] sm:$0xff]
      %v1604 = vld [vmem:[#allocation3 + $0x22] sm:$0xff]
      %v1605 = vld [vmem:[#allocation3 + $0x2a] sm:$0xff]
      %v1606 = vld [vmem:[#allocation3 + $0x32] sm:$0xff]
      %v1607 = vld [vmem:[#allocation3 + $0x3a] sm:$0xff]
      %v1608 = vld [vmem:[#allocation3 + $0x42] sm:$0xff]
      %1618 = vrot.lane.b32.xlu0 %v1600, 32
      %v1619 = vpop.permute.xlu0 %1618
      %1620 = vrot.lane.b32.xlu0 %v1601, 32
      %v1621 = vpop.permute.xlu0 %1620
      %1622 = vrot.lane.b32.xlu0 %v1602, 32
      %v1623 = vpop.permute.xlu0 %1622
      %1624 = vrot.lane.b32.xlu0 %v1603, 32
      %v1625 = vpop.permute.xlu0 %1624
      %1626 = vrot.lane.b32.xlu0 %v1604, 32
      %v1627 = vpop.permute.xlu0 %1626
      %1628 = vrot.lane.b32.xlu0 %v1605, 32
      %v1629 = vpop.permute.xlu0 %1628
      %1630 = vrot.lane.b32.xlu0 %v1606, 32
      %v1631 = vpop.permute.xlu0 %1630
      %1632 = vrot.lane.b32.xlu0 %v1607, 32
      %v1633 = vpop.permute.xlu0 %1632
      %1634 = vrot.lane.b32.xlu0 %v1608, 32
      %v1635 = vpop.permute.xlu0 %1634
      %1645 = vst.msk [vmem:[#allocation2] sm:$0xff] %vm722, %v1619
      %1646 = vst.msk [vmem:[#allocation2 + $0x10] sm:$0xff] %vm722, %v1621
      %1647 = vst.msk [vmem:[#allocation2 + $0x20] sm:$0xff] %vm722, %v1623
      %1648 = vst.msk [vmem:[#allocation2 + $0x30] sm:$0xff] %vm722, %v1625
      %1649 = vst.msk [vmem:[#allocation2 + $0x40] sm:$0xff] %vm722, %v1627
      %1650 = vst.msk [vmem:[#allocation2 + $0x50] sm:$0xff] %vm722, %v1629
      %1651 = vst.msk [vmem:[#allocation2 + $0x60] sm:$0xff] %vm722, %v1631
      %1652 = vst.msk [vmem:[#allocation2 + $0x70] sm:$0xff] %vm722, %v1633
      %1653 = vst.msk [vmem:[#allocation2 + $0x80] sm:$0xff] %vm722, %v1635
      %v1654 = vld [vmem:[#allocation3 + $0x9] sm:$0xff]
      %v1655 = vld [vmem:[#allocation3 + $0x11] sm:$0xff]
      %v1656 = vld [vmem:[#allocation3 + $0x19] sm:$0xff]
      %v1657 = vld [vmem:[#allocation3 + $0x21] sm:$0xff]
      %v1658 = vld [vmem:[#allocation3 + $0x29] sm:$0xff]
      %v1659 = vld [vmem:[#allocation3 + $0x31] sm:$0xff]
      %v1660 = vld [vmem:[#allocation3 + $0x39] sm:$0xff]
      %v1661 = vld [vmem:[#allocation3 + $0x41] sm:$0xff]
      %v1662 = vld [vmem:[#allocation3 + $0x49] sm:$0xff]
      %1672 = vrot.lane.b32.xlu0 %v1654, 48
      %v1673 = vpop.permute.xlu0 %1672
      %1674 = vrot.lane.b32.xlu0 %v1655, 48
      %v1675 = vpop.permute.xlu0 %1674
      %1676 = vrot.lane.b32.xlu0 %v1656, 48
      %v1677 = vpop.permute.xlu0 %1676
      %1678 = vrot.lane.b32.xlu0 %v1657, 48
      %v1679 = vpop.permute.xlu0 %1678
      %1680 = vrot.lane.b32.xlu0 %v1658, 48
      %v1681 = vpop.permute.xlu0 %1680
      %1682 = vrot.lane.b32.xlu0 %v1659, 48
      %v1683 = vpop.permute.xlu0 %1682
      %1684 = vrot.lane.b32.xlu0 %v1660, 48
      %v1685 = vpop.permute.xlu0 %1684
      %1686 = vrot.lane.b32.xlu0 %v1661, 48
      %v1687 = vpop.permute.xlu0 %1686
      %1688 = vrot.lane.b32.xlu0 %v1662, 48
      %v1689 = vpop.permute.xlu0 %1688
      %1699 = vst.msk [vmem:[#allocation2] sm:$0xff] %vm777, %v1673
      %1700 = vst.msk [vmem:[#allocation2 + $0x10] sm:$0xff] %vm777, %v1675
      %1701 = vst.msk [vmem:[#allocation2 + $0x20] sm:$0xff] %vm777, %v1677
      %1702 = vst.msk [vmem:[#allocation2 + $0x30] sm:$0xff] %vm777, %v1679
      %1703 = vst.msk [vmem:[#allocation2 + $0x40] sm:$0xff] %vm777, %v1681
      %1704 = vst.msk [vmem:[#allocation2 + $0x50] sm:$0xff] %vm777, %v1683
      %1705 = vst.msk [vmem:[#allocation2 + $0x60] sm:$0xff] %vm777, %v1685
      %1706 = vst.msk [vmem:[#allocation2 + $0x70] sm:$0xff] %vm777, %v1687
      %1707 = vst.msk [vmem:[#allocation2 + $0x80] sm:$0xff] %vm777, %v1689
      %v1708 = vld [vmem:[#allocation3 + $0xa] sm:$0xff]
      %v1709 = vld [vmem:[#allocation3 + $0x12] sm:$0xff]
      %v1710 = vld [vmem:[#allocation3 + $0x1a] sm:$0xff]
      %v1711 = vld [vmem:[#allocation3 + $0x22] sm:$0xff]
      %v1712 = vld [vmem:[#allocation3 + $0x2a] sm:$0xff]
      %v1713 = vld [vmem:[#allocation3 + $0x32] sm:$0xff]
      %v1714 = vld [vmem:[#allocation3 + $0x3a] sm:$0xff]
      %v1715 = vld [vmem:[#allocation3 + $0x42] sm:$0xff]
      %v1716 = vld [vmem:[#allocation3 + $0x4a] sm:$0xff]
      %1726 = vrot.lane.b32.xlu0 %v1708, 64
      %v1727 = vpop.permute.xlu0 %1726
      %1728 = vrot.lane.b32.xlu0 %v1709, 64
      %v1729 = vpop.permute.xlu0 %1728
      %1730 = vrot.lane.b32.xlu0 %v1710, 64
      %v1731 = vpop.permute.xlu0 %1730
      %1732 = vrot.lane.b32.xlu0 %v1711, 64
      %v1733 = vpop.permute.xlu0 %1732
      %1734 = vrot.lane.b32.xlu0 %v1712, 64
      %v1735 = vpop.permute.xlu0 %1734
      %1736 = vrot.lane.b32.xlu0 %v1713, 64
      %v1737 = vpop.permute.xlu0 %1736
      %1738 = vrot.lane.b32.xlu0 %v1714, 64
      %v1739 = vpop.permute.xlu0 %1738
      %1740 = vrot.lane.b32.xlu0 %v1715, 64
      %v1741 = vpop.permute.xlu0 %1740
      %1742 = vrot.lane.b32.xlu0 %v1716, 64
      %v1743 = vpop.permute.xlu0 %1742
      %1753 = vst.msk [vmem:[#allocation2] sm:$0xff] %vm832, %v1727
      %1754 = vst.msk [vmem:[#allocation2 + $0x10] sm:$0xff] %vm832, %v1729
      %1755 = vst.msk [vmem:[#allocation2 + $0x20] sm:$0xff] %vm832, %v1731
      %1756 = vst.msk [vmem:[#allocation2 + $0x30] sm:$0xff] %vm832, %v1733
      %1757 = vst.msk [vmem:[#allocation2 + $0x40] sm:$0xff] %vm832, %v1735
      %1758 = vst.msk [vmem:[#allocation2 + $0x50] sm:$0xff] %vm832, %v1737
      %1759 = vst.msk [vmem:[#allocation2 + $0x60] sm:$0xff] %vm832, %v1739
      %1760 = vst.msk [vmem:[#allocation2 + $0x70] sm:$0xff] %vm832, %v1741
      %1761 = vst.msk [vmem:[#allocation2 + $0x80] sm:$0xff] %vm832, %v1743
      %v1762 = vld [vmem:[#allocation3 + $0xb] sm:$0xff]
      %v1763 = vld [vmem:[#allocation3 + $0x13] sm:$0xff]
      %v1764 = vld [vmem:[#allocation3 + $0x1b] sm:$0xff]
      %v1765 = vld [vmem:[#allocation3 + $0x23] sm:$0xff]
      %v1766 = vld [vmem:[#allocation3 + $0x2b] sm:$0xff]
      %v1767 = vld [vmem:[#allocation3 + $0x33] sm:$0xff]
      %v1768 = vld [vmem:[#allocation3 + $0x3b] sm:$0xff]
      %v1769 = vld [vmem:[#allocation3 + $0x43] sm:$0xff]
      %v1770 = vld [vmem:[#allocation3 + $0x4b] sm:$0xff]
      %1780 = vrot.lane.b32.xlu0 %v1762, 80
      %v1781 = vpop.permute.xlu0 %1780
      %1782 = vrot.lane.b32.xlu0 %v1763, 80
      %v1783 = vpop.permute.xlu0 %1782
      %1784 = vrot.lane.b32.xlu0 %v1764, 80
      %v1785 = vpop.permute.xlu0 %1784
      %1786 = vrot.lane.b32.xlu0 %v1765, 80
      %v1787 = vpop.permute.xlu0 %1786
      %1788 = vrot.lane.b32.xlu0 %v1766, 80
      %v1789 = vpop.permute.xlu0 %1788
      %1790 = vrot.lane.b32.xlu0 %v1767, 80
      %v1791 = vpop.permute.xlu0 %1790
      %1792 = vrot.lane.b32.xlu0 %v1768, 80
      %v1793 = vpop.permute.xlu0 %1792
      %1794 = vrot.lane.b32.xlu0 %v1769, 80
      %v1795 = vpop.permute.xlu0 %1794
      %1796 = vrot.lane.b32.xlu0 %v1770, 80
      %v1797 = vpop.permute.xlu0 %1796
      %1807 = vst.msk [vmem:[#allocation2] sm:$0xff] %vm887, %v1781
      %1808 = vst.msk [vmem:[#allocation2 + $0x10] sm:$0xff] %vm887, %v1783
      %1809 = vst.msk [vmem:[#allocation2 + $0x20] sm:$0xff] %vm887, %v1785
      %1810 = vst.msk [vmem:[#allocation2 + $0x30] sm:$0xff] %vm887, %v1787
      %1811 = vst.msk [vmem:[#allocation2 + $0x40] sm:$0xff] %vm887, %v1789
      %1812 = vst.msk [vmem:[#allocation2 + $0x50] sm:$0xff] %vm887, %v1791
      %1813 = vst.msk [vmem:[#allocation2 + $0x60] sm:$0xff] %vm887, %v1793
      %1814 = vst.msk [vmem:[#allocation2 + $0x70] sm:$0xff] %vm887, %v1795
      %1815 = vst.msk [vmem:[#allocation2 + $0x80] sm:$0xff] %vm887, %v1797
      %v1816 = vld [vmem:[#allocation3 + $0x12] sm:$0xff]
      %v1817 = vld [vmem:[#allocation3 + $0x1a] sm:$0xff]
      %v1818 = vld [vmem:[#allocation3 + $0x22] sm:$0xff]
      %v1819 = vld [vmem:[#allocation3 + $0x2a] sm:$0xff]
      %v1820 = vld [vmem:[#allocation3 + $0x32] sm:$0xff]
      %v1821 = vld [vmem:[#allocation3 + $0x3a] sm:$0xff]
      %v1822 = vld [vmem:[#allocation3 + $0x42] sm:$0xff]
      %v1823 = vld [vmem:[#allocation3 + $0x4a] sm:$0xff]
      %v1824 = vld [vmem:[#allocation3 + $0x52] sm:$0xff]
      %1834 = vrot.lane.b32.xlu0 %v1816, 96
      %v1835 = vpop.permute.xlu0 %1834
      %1836 = vrot.lane.b32.xlu0 %v1817, 96
      %v1837 = vpop.permute.xlu0 %1836
      %1838 = vrot.lane.b32.xlu0 %v1818, 96
      %v1839 = vpop.permute.xlu0 %1838
      %1840 = vrot.lane.b32.xlu0 %v1819, 96
      %v1841 = vpop.permute.xlu0 %1840
      %1842 = vrot.lane.b32.xlu0 %v1820, 96
      %v1843 = vpop.permute.xlu0 %1842
      %1844 = vrot.lane.b32.xlu0 %v1821, 96
      %v1845 = vpop.permute.xlu0 %1844
      %1846 = vrot.lane.b32.xlu0 %v1822, 96
      %v1847 = vpop.permute.xlu0 %1846
      %1848 = vrot.lane.b32.xlu0 %v1823, 96
      %v1849 = vpop.permute.xlu0 %1848
      %1850 = vrot.lane.b32.xlu0 %v1824, 96
      %v1851 = vpop.permute.xlu0 %1850
      %1861 = vst.msk [vmem:[#allocation2] sm:$0xff] %vm942, %v1835
      %1862 = vst.msk [vmem:[#allocation2 + $0x10] sm:$0xff] %vm942, %v1837
      %1863 = vst.msk [vmem:[#allocation2 + $0x20] sm:$0xff] %vm942, %v1839
      %1864 = vst.msk [vmem:[#allocation2 + $0x30] sm:$0xff] %vm942, %v1841
      %1865 = vst.msk [vmem:[#allocation2 + $0x40] sm:$0xff] %vm942, %v1843
      %1866 = vst.msk [vmem:[#allocation2 + $0x50] sm:$0xff] %vm942, %v1845
      %1867 = vst.msk [vmem:[#allocation2 + $0x60] sm:$0xff] %vm942, %v1847
      %1868 = vst.msk [vmem:[#allocation2 + $0x70] sm:$0xff] %vm942, %v1849
      %1869 = vst.msk [vmem:[#allocation2 + $0x80] sm:$0xff] %vm942, %v1851
      %v1870 = vld [vmem:[#allocation3 + $0x13] sm:$0xff]
      %v1871 = vld [vmem:[#allocation3 + $0x1b] sm:$0xff]
      %v1872 = vld [vmem:[#allocation3 + $0x23] sm:$0xff]
      %v1873 = vld [vmem:[#allocation3 + $0x2b] sm:$0xff]
      %v1874 = vld [vmem:[#allocation3 + $0x33] sm:$0xff]
      %v1875 = vld [vmem:[#allocation3 + $0x3b] sm:$0xff]
      %v1876 = vld [vmem:[#allocation3 + $0x43] sm:$0xff]
      %v1877 = vld [vmem:[#allocation3 + $0x4b] sm:$0xff]
      %v1878 = vld [vmem:[#allocation3 + $0x53] sm:$0xff]
      %1888 = vrot.lane.b32.xlu0 %v1870, 112
      %v1889 = vpop.permute.xlu0 %1888
      %1890 = vrot.lane.b32.xlu0 %v1871, 112
      %v1891 = vpop.permute.xlu0 %1890
      %1892 = vrot.lane.b32.xlu0 %v1872, 112
      %v1893 = vpop.permute.xlu0 %1892
      %1894 = vrot.lane.b32.xlu0 %v1873, 112
      %v1895 = vpop.permute.xlu0 %1894
      %1896 = vrot.lane.b32.xlu0 %v1874, 112
      %v1897 = vpop.permute.xlu0 %1896
      %1898 = vrot.lane.b32.xlu0 %v1875, 112
      %v1899 = vpop.permute.xlu0 %1898
      %1900 = vrot.lane.b32.xlu0 %v1876, 112
      %v1901 = vpop.permute.xlu0 %1900
      %1902 = vrot.lane.b32.xlu0 %v1877, 112
      %v1903 = vpop.permute.xlu0 %1902
      %1904 = vrot.lane.b32.xlu0 %v1878, 112
      %v1905 = vpop.permute.xlu0 %1904
      %1915 = vst.msk [vmem:[#allocation2] sm:$0xff] %vm997, %v1889
      %1916 = vst.msk [vmem:[#allocation2 + $0x10] sm:$0xff] %vm997, %v1891
      %1917 = vst.msk [vmem:[#allocation2 + $0x20] sm:$0xff] %vm997, %v1893
      %1918 = vst.msk [vmem:[#allocation2 + $0x30] sm:$0xff] %vm997, %v1895
      %1919 = vst.msk [vmem:[#allocation2 + $0x40] sm:$0xff] %vm997, %v1897
      %1920 = vst.msk [vmem:[#allocation2 + $0x50] sm:$0xff] %vm997, %v1899
      %1921 = vst.msk [vmem:[#allocation2 + $0x60] sm:$0xff] %vm997, %v1901
      %1922 = vst.msk [vmem:[#allocation2 + $0x70] sm:$0xff] %vm997, %v1903
      %1923 = vst.msk [vmem:[#allocation2 + $0x80] sm:$0xff] %vm997, %v1905
      %v1924 = vld [vmem:[#allocation3 + $0x14] sm:$0xff]
      %v1925 = vld [vmem:[#allocation3 + $0x1c] sm:$0xff]
      %v1926 = vld [vmem:[#allocation3 + $0x24] sm:$0xff]
      %v1927 = vld [vmem:[#allocation3 + $0x2c] sm:$0xff]
      %v1928 = vld [vmem:[#allocation3 + $0x34] sm:$0xff]
      %v1929 = vld [vmem:[#allocation3 + $0x3c] sm:$0xff]
      %v1930 = vld [vmem:[#allocation3 + $0x44] sm:$0xff]
      %v1931 = vld [vmem:[#allocation3 + $0x4c] sm:$0xff]
      %v1932 = vld [vmem:[#allocation3 + $0x54] sm:$0xff]
      %1933 = vst.msk [vmem:[#allocation2 + $0x8] sm:$0xff] %vm311, %v1924
      %1934 = vst.msk [vmem:[#allocation2 + $0x18] sm:$0xff] %vm311, %v1925
      %1935 = vst.msk [vmem:[#allocation2 + $0x28] sm:$0xff] %vm311, %v1926
      %1936 = vst.msk [vmem:[#allocation2 + $0x38] sm:$0xff] %vm311, %v1927
      %1937 = vst.msk [vmem:[#allocation2 + $0x48] sm:$0xff] %vm311, %v1928
      %1938 = vst.msk [vmem:[#allocation2 + $0x58] sm:$0xff] %vm311, %v1929
      %1939 = vst.msk [vmem:[#allocation2 + $0x68] sm:$0xff] %vm311, %v1930
      %1940 = vst.msk [vmem:[#allocation2 + $0x78] sm:$0xff] %vm311, %v1931
      %1941 = vst.msk [vmem:[#allocation2 + $0x88] sm:$0xff] %vm311, %v1932
      %v1942 = vld [vmem:[#allocation2] sm:$0xff]
      %v1943 = vld [vmem:[#allocation2 + $0x8] sm:$0xff]
      %v1944 = vld [vmem:[#allocation2 + $0x10] sm:$0xff]
      %v1945 = vld [vmem:[#allocation2 + $0x18] sm:$0xff]
      %v1946 = vld [vmem:[#allocation2 + $0x20] sm:$0xff]
      %v1947 = vld [vmem:[#allocation2 + $0x28] sm:$0xff]
      %v1948 = vld [vmem:[#allocation2 + $0x30] sm:$0xff]
      %v1949 = vld [vmem:[#allocation2 + $0x38] sm:$0xff]
      %v1950 = vld [vmem:[#allocation2 + $0x40] sm:$0xff]
      %v1951 = vld [vmem:[#allocation2 + $0x48] sm:$0xff]
      %v1952 = vld [vmem:[#allocation2 + $0x50] sm:$0xff]
      %v1953 = vld [vmem:[#allocation2 + $0x58] sm:$0xff]
      %v1954 = vld [vmem:[#allocation2 + $0x60] sm:$0xff]
      %v1955 = vld [vmem:[#allocation2 + $0x68] sm:$0xff]
      %v1956 = vld [vmem:[#allocation2 + $0x70] sm:$0xff]
      %v1957 = vld [vmem:[#allocation2 + $0x78] sm:$0xff]
      %v1958 = vld [vmem:[#allocation2 + $0x80] sm:$0xff]
      %v1959 = vld [vmem:[#allocation2 + $0x88] sm:$0xff]
      %v1960 = vld [vmem:[%s2] sm:$0xff]
      %v1961 = vld [vmem:[%s2 + $0x8] sm:$0xff]
      %v1962 = vld [vmem:[%s2 + $0x10] sm:$0xff]
      %v1963 = vld [vmem:[%s2 + $0x18] sm:$0xff]
      %v1964 = vld [vmem:[%s2 + $0x20] sm:$0xff]
      %v1965 = vld [vmem:[%s2 + $0x28] sm:$0xff]
      %v1966 = vld [vmem:[%s2 + $0x30] sm:$0xff]
      %v1967 = vld [vmem:[%s2 + $0x38] sm:$0xff]
      %v1968 = vld [vmem:[%s2 + $0x40] sm:$0xff]
      %v1969 = vld [vmem:[%s2 + $0x48] sm:$0xff]
      %v1970 = vld [vmem:[%s2 + $0x50] sm:$0xff]
      %v1971 = vld [vmem:[%s2 + $0x58] sm:$0xff]
      %v1972 = vld [vmem:[%s2 + $0x60] sm:$0xff]
      %v1973 = vld [vmem:[%s2 + $0x68] sm:$0xff]
      %v1974 = vld [vmem:[%s2 + $0x70] sm:$0xff]
      %v1975 = vld [vmem:[%s2 + $0x78] sm:$0xff]
      %v1976 = vld [vmem:[%s2 + $0x80] sm:$0xff]
      %v1977 = vld [vmem:[%s2 + $0x88] sm:$0xff]
      %v1979 = vsel %vm311, %v1943, 0
      %v1982 = vsel %vm311, %v1945, 0
      %v1985 = vsel %vm311, %v1947, 0
      %v1988 = vsel %vm311, %v1949, 0
      %v1991 = vsel %vm311, %v1951, 0
      %v1994 = vsel %vm311, %v1953, 0
      %v1997 = vsel %vm311, %v1955, 0
      %v2000 = vsel %vm311, %v1957, 0
      %v2003 = vsel %vm311, %v1959, 0
      %2005 = vmatpush.msra.mxu0 %v1975
      %2006 = vmatpush.msra.mxu0 %v1974
      %2007 = vmatpush.msra.mxu0 %v1973
      %2008 = vmatpush.msra.mxu0 %v1972
      %2009 = vmatpush.msra.mxu0 %v1971
      %2010 = vmatpush.msra.mxu0 %v1970
      %2011 = vmatpush.msra.mxu0 %v1969
      %2012 = vmatpush.msra.mxu0 %v1968
      %2013 = vmatpush.msra.mxu0 %v1967
      %2014 = vmatpush.msra.mxu0 %v1966
      %2015 = vmatpush.msra.mxu0 %v1965
      %2016 = vmatpush.msra.mxu0 %v1964
      %2017 = vmatpush.msra.mxu0 %v1963
      %2018 = vmatpush.msra.mxu0 %v1962
      %2019 = vmatpush.msra.mxu0 %v1961
      %2020 = vmatpush.msra.mxu0 %v1960
      %2021 = vmatmul.f32.gmra.mxu0 %v1942
      %v2022 = vpop.f32.mrf.mxu0
      %v2023 = vadd.f32 0.0, %v2022
      %2024 = vmatmul.f32.gmra.mxu0 %v1944
      %v2025 = vpop.f32.mrf.mxu0
      %v2026 = vadd.f32 0.0, %v2025
      %2027 = vmatmul.f32.gmra.mxu0 %v1946
      %v2028 = vpop.f32.mrf.mxu0
      %v2029 = vadd.f32 0.0, %v2028
      %2030 = vmatmul.f32.gmra.mxu0 %v1948
      %v2031 = vpop.f32.mrf.mxu0
      %v2032 = vadd.f32 0.0, %v2031
      %2033 = vmatmul.f32.gmra.mxu0 %v1950
      %v2034 = vpop.f32.mrf.mxu0
      %v2035 = vadd.f32 0.0, %v2034
      %2036 = vmatmul.f32.gmra.mxu0 %v1952
      %v2037 = vpop.f32.mrf.mxu0
      %v2038 = vadd.f32 0.0, %v2037
      %2039 = vmatmul.f32.gmra.mxu0 %v1954
      %v2040 = vpop.f32.mrf.mxu0
      %v2041 = vadd.f32 0.0, %v2040
      %2042 = vmatmul.f32.gmra.mxu0 %v1956
      %v2043 = vpop.f32.mrf.mxu0
      %v2044 = vadd.f32 0.0, %v2043
      %2045 = vmatmul.f32.gmra.mxu0 %v1958
      %v2046 = vpop.f32.mrf.mxu0
      %v2047 = vadd.f32 0.0, %v2046
      %2048 = vdwg.mxu0
      %2049 = vmatpush.msra.mxu0 0.0
      %2050 = vmatpush.msra.mxu0 0.0
      %2051 = vmatpush.msra.mxu0 0.0
      %2052 = vmatpush.msra.mxu0 0.0
      %2053 = vmatpush.msra.mxu0 0.0
      %2054 = vmatpush.msra.mxu0 0.0
      %2055 = vmatpush.msra.mxu0 0.0
      %2056 = vmatpush.msra.mxu0 0.0
      %2057 = vmatpush.msra.mxu0 0.0
      %2058 = vmatpush.msra.mxu0 0.0
      %2059 = vmatpush.msra.mxu0 0.0
      %2060 = vmatpush.msra.mxu0 0.0
      %2061 = vmatpush.msra.mxu0 0.0
      %2062 = vmatpush.msra.mxu0 0.0
      %2063 = vmatpush.msra.mxu0 %v1977
      %2064 = vmatpush.msra.mxu0 %v1976
      %2065 = vmatmul.f32.gmra.mxu0 %v1979
      %v2066 = vpop.f32.mrf.mxu0
      %v2067 = vadd.f32 %v2023, %v2066
      %2068 = vmatmul.f32.gmra.mxu0 %v1982
      %v2069 = vpop.f32.mrf.mxu0
      %v2070 = vadd.f32 %v2026, %v2069
      %2071 = vmatmul.f32.gmra.mxu0 %v1985
      %v2072 = vpop.f32.mrf.mxu0
      %v2073 = vadd.f32 %v2029, %v2072
      %2074 = vmatmul.f32.gmra.mxu0 %v1988
      %v2075 = vpop.f32.mrf.mxu0
      %v2076 = vadd.f32 %v2032, %v2075
      %2077 = vmatmul.f32.gmra.mxu0 %v1991
      %v2078 = vpop.f32.mrf.mxu0
      %v2079 = vadd.f32 %v2035, %v2078
      %2080 = vmatmul.f32.gmra.mxu0 %v1994
      %v2081 = vpop.f32.mrf.mxu0
      %v2082 = vadd.f32 %v2038, %v2081
      %2083 = vmatmul.f32.gmra.mxu0 %v1997
      %v2084 = vpop.f32.mrf.mxu0
      %v2085 = vadd.f32 %v2041, %v2084
      %2086 = vmatmul.f32.gmra.mxu0 %v2000
      %v2087 = vpop.f32.mrf.mxu0
      %v2088 = vadd.f32 %v2044, %v2087
      %2089 = vmatmul.f32.gmra.mxu0 %v2003
      %v2090 = vpop.f32.mrf.mxu0
      %v2091 = vadd.f32 %v2047, %v2090
      %2092 = vdwg.mxu0
      %v2093 = vmax.f32 %v2067, 0.0
      %v2094 = vmax.f32 %v2070, 0.0
      %v2095 = vmax.f32 %v2073, 0.0
      %v2096 = vmax.f32 %v2076, 0.0
      %v2097 = vmax.f32 %v2079, 0.0
      %v2098 = vmax.f32 %v2082, 0.0
      %v2099 = vmax.f32 %v2085, 0.0
      %v2100 = vmax.f32 %v2088, 0.0
      %v2101 = vmax.f32 %v2091, 0.0
      %v2102 = vld [vmem:[%s304 + $0xa] sm:$0xff]
      %v2103 = vld [vmem:[%s304 + $0x12] sm:$0xff]
      %v2104 = vld [vmem:[%s304 + $0x1a] sm:$0xff]
      %v2105 = vld [vmem:[%s304 + $0x22] sm:$0xff]
      %v2106 = vld [vmem:[%s304 + $0x2a] sm:$0xff]
      %v2107 = vld [vmem:[%s304 + $0x32] sm:$0xff]
      %v2108 = vld [vmem:[%s304 + $0x3a] sm:$0xff]
      %v2109 = vld [vmem:[%s304 + $0x42] sm:$0xff]
      %v2110 = vld [vmem:[%s304 + $0x4a] sm:$0xff]
      %2111 = vst.msk [vmem:[#allocation4] sm:$0xff] %vm311, %v2102
      %2112 = vst.msk [vmem:[#allocation4 + $0x8] sm:$0xff] %vm311, %v2103
      %2113 = vst.msk [vmem:[#allocation4 + $0x10] sm:$0xff] %vm311, %v2104
      %2114 = vst.msk [vmem:[#allocation4 + $0x18] sm:$0xff] %vm311, %v2105
      %2115 = vst.msk [vmem:[#allocation4 + $0x20] sm:$0xff] %vm311, %v2106
      %2116 = vst.msk [vmem:[#allocation4 + $0x28] sm:$0xff] %vm311, %v2107
      %2117 = vst.msk [vmem:[#allocation4 + $0x30] sm:$0xff] %vm311, %v2108
      %2118 = vst.msk [vmem:[#allocation4 + $0x38] sm:$0xff] %vm311, %v2109
      %2119 = vst.msk [vmem:[#allocation4 + $0x40] sm:$0xff] %vm311, %v2110
      %v2120 = vld [vmem:[%s356 + $0xa] sm:$0xff]
      %v2121 = vld [vmem:[%s356 + $0x12] sm:$0xff]
      %v2122 = vld [vmem:[%s356 + $0x1a] sm:$0xff]
      %v2123 = vld [vmem:[%s356 + $0x22] sm:$0xff]
      %v2124 = vld [vmem:[%s356 + $0x2a] sm:$0xff]
      %v2125 = vld [vmem:[%s356 + $0x32] sm:$0xff]
      %v2126 = vld [vmem:[%s356 + $0x3a] sm:$0xff]
      %v2127 = vld [vmem:[%s356 + $0x42] sm:$0xff]
      %v2128 = vld [vmem:[%s356 + $0x4a] sm:$0xff]
      %2138 = vrot.lane.b32.xlu0 %v2120, 16
      %v2139 = vpop.permute.xlu0 %2138
      %2140 = vrot.lane.b32.xlu0 %v2121, 16
      %v2141 = vpop.permute.xlu0 %2140
      %2142 = vrot.lane.b32.xlu0 %v2122, 16
      %v2143 = vpop.permute.xlu0 %2142
      %2144 = vrot.lane.b32.xlu0 %v2123, 16
      %v2145 = vpop.permute.xlu0 %2144
      %2146 = vrot.lane.b32.xlu0 %v2124, 16
      %v2147 = vpop.permute.xlu0 %2146
      %2148 = vrot.lane.b32.xlu0 %v2125, 16
      %v2149 = vpop.permute.xlu0 %2148
      %2150 = vrot.lane.b32.xlu0 %v2126, 16
      %v2151 = vpop.permute.xlu0 %2150
      %2152 = vrot.lane.b32.xlu0 %v2127, 16
      %v2153 = vpop.permute.xlu0 %2152
      %2154 = vrot.lane.b32.xlu0 %v2128, 16
      %v2155 = vpop.permute.xlu0 %2154
      %2165 = vst.msk [vmem:[#allocation4] sm:$0xff] %vm667, %v2139
      %2166 = vst.msk [vmem:[#allocation4 + $0x8] sm:$0xff] %vm667, %v2141
      %2167 = vst.msk [vmem:[#allocation4 + $0x10] sm:$0xff] %vm667, %v2143
      %2168 = vst.msk [vmem:[#allocation4 + $0x18] sm:$0xff] %vm667, %v2145
      %2169 = vst.msk [vmem:[#allocation4 + $0x20] sm:$0xff] %vm667, %v2147
      %2170 = vst.msk [vmem:[#allocation4 + $0x28] sm:$0xff] %vm667, %v2149
      %2171 = vst.msk [vmem:[#allocation4 + $0x30] sm:$0xff] %vm667, %v2151
      %2172 = vst.msk [vmem:[#allocation4 + $0x38] sm:$0xff] %vm667, %v2153
      %2173 = vst.msk [vmem:[#allocation4 + $0x40] sm:$0xff] %vm667, %v2155
      %v2174 = vld [vmem:[%s396 + $0xa] sm:$0xff]
      %v2175 = vld [vmem:[%s396 + $0x12] sm:$0xff]
      %v2176 = vld [vmem:[%s396 + $0x1a] sm:$0xff]
      %v2177 = vld [vmem:[%s396 + $0x22] sm:$0xff]
      %v2178 = vld [vmem:[%s396 + $0x2a] sm:$0xff]
      %v2179 = vld [vmem:[%s396 + $0x32] sm:$0xff]
      %v2180 = vld [vmem:[%s396 + $0x3a] sm:$0xff]
      %v2181 = vld [vmem:[%s396 + $0x42] sm:$0xff]
      %v2182 = vld [vmem:[%s396 + $0x4a] sm:$0xff]
      %2192 = vrot.lane.b32.xlu0 %v2174, 32
      %v2193 = vpop.permute.xlu0 %2192
      %2194 = vrot.lane.b32.xlu0 %v2175, 32
      %v2195 = vpop.permute.xlu0 %2194
      %2196 = vrot.lane.b32.xlu0 %v2176, 32
      %v2197 = vpop.permute.xlu0 %2196
      %2198 = vrot.lane.b32.xlu0 %v2177, 32
      %v2199 = vpop.permute.xlu0 %2198
      %2200 = vrot.lane.b32.xlu0 %v2178, 32
      %v2201 = vpop.permute.xlu0 %2200
      %2202 = vrot.lane.b32.xlu0 %v2179, 32
      %v2203 = vpop.permute.xlu0 %2202
      %2204 = vrot.lane.b32.xlu0 %v2180, 32
      %v2205 = vpop.permute.xlu0 %2204
      %2206 = vrot.lane.b32.xlu0 %v2181, 32
      %v2207 = vpop.permute.xlu0 %2206
      %2208 = vrot.lane.b32.xlu0 %v2182, 32
      %v2209 = vpop.permute.xlu0 %2208
      %2219 = vst.msk [vmem:[#allocation4] sm:$0xff] %vm722, %v2193
      %2220 = vst.msk [vmem:[#allocation4 + $0x8] sm:$0xff] %vm722, %v2195
      %2221 = vst.msk [vmem:[#allocation4 + $0x10] sm:$0xff] %vm722, %v2197
      %2222 = vst.msk [vmem:[#allocation4 + $0x18] sm:$0xff] %vm722, %v2199
      %2223 = vst.msk [vmem:[#allocation4 + $0x20] sm:$0xff] %vm722, %v2201
      %2224 = vst.msk [vmem:[#allocation4 + $0x28] sm:$0xff] %vm722, %v2203
      %2225 = vst.msk [vmem:[#allocation4 + $0x30] sm:$0xff] %vm722, %v2205
      %2226 = vst.msk [vmem:[#allocation4 + $0x38] sm:$0xff] %vm722, %v2207
      %2227 = vst.msk [vmem:[#allocation4 + $0x40] sm:$0xff] %vm722, %v2209
      %v2228 = vld [vmem:[%s436 + $0xa] sm:$0xff]
      %v2229 = vld [vmem:[%s436 + $0x12] sm:$0xff]
      %v2230 = vld [vmem:[%s436 + $0x1a] sm:$0xff]
      %v2231 = vld [vmem:[%s436 + $0x22] sm:$0xff]
      %v2232 = vld [vmem:[%s436 + $0x2a] sm:$0xff]
      %v2233 = vld [vmem:[%s436 + $0x32] sm:$0xff]
      %v2234 = vld [vmem:[%s436 + $0x3a] sm:$0xff]
      %v2235 = vld [vmem:[%s436 + $0x42] sm:$0xff]
      %v2236 = vld [vmem:[%s436 + $0x4a] sm:$0xff]
      %2246 = vrot.lane.b32.xlu0 %v2228, 48
      %v2247 = vpop.permute.xlu0 %2246
      %2248 = vrot.lane.b32.xlu0 %v2229, 48
      %v2249 = vpop.permute.xlu0 %2248
      %2250 = vrot.lane.b32.xlu0 %v2230, 48
      %v2251 = vpop.permute.xlu0 %2250
      %2252 = vrot.lane.b32.xlu0 %v2231, 48
      %v2253 = vpop.permute.xlu0 %2252
      %2254 = vrot.lane.b32.xlu0 %v2232, 48
      %v2255 = vpop.permute.xlu0 %2254
      %2256 = vrot.lane.b32.xlu0 %v2233, 48
      %v2257 = vpop.permute.xlu0 %2256
      %2258 = vrot.lane.b32.xlu0 %v2234, 48
      %v2259 = vpop.permute.xlu0 %2258
      %2260 = vrot.lane.b32.xlu0 %v2235, 48
      %v2261 = vpop.permute.xlu0 %2260
      %2262 = vrot.lane.b32.xlu0 %v2236, 48
      %v2263 = vpop.permute.xlu0 %2262
      %2273 = vst.msk [vmem:[#allocation4] sm:$0xff] %vm777, %v2247
      %2274 = vst.msk [vmem:[#allocation4 + $0x8] sm:$0xff] %vm777, %v2249
      %2275 = vst.msk [vmem:[#allocation4 + $0x10] sm:$0xff] %vm777, %v2251
      %2276 = vst.msk [vmem:[#allocation4 + $0x18] sm:$0xff] %vm777, %v2253
      %2277 = vst.msk [vmem:[#allocation4 + $0x20] sm:$0xff] %vm777, %v2255
      %2278 = vst.msk [vmem:[#allocation4 + $0x28] sm:$0xff] %vm777, %v2257
      %2279 = vst.msk [vmem:[#allocation4 + $0x30] sm:$0xff] %vm777, %v2259
      %2280 = vst.msk [vmem:[#allocation4 + $0x38] sm:$0xff] %vm777, %v2261
      %2281 = vst.msk [vmem:[#allocation4 + $0x40] sm:$0xff] %vm777, %v2263
      %v2282 = vld [vmem:[#allocation4] sm:$0xff]
      %v2283 = vld [vmem:[#allocation4 + $0x8] sm:$0xff]
      %v2284 = vld [vmem:[#allocation4 + $0x10] sm:$0xff]
      %v2285 = vld [vmem:[#allocation4 + $0x18] sm:$0xff]
      %v2286 = vld [vmem:[#allocation4 + $0x20] sm:$0xff]
      %v2287 = vld [vmem:[#allocation4 + $0x28] sm:$0xff]
      %v2288 = vld [vmem:[#allocation4 + $0x30] sm:$0xff]
      %v2289 = vld [vmem:[#allocation4 + $0x38] sm:$0xff]
      %v2290 = vld [vmem:[#allocation4 + $0x40] sm:$0xff]
      %v2291 = vadd.f32 %v2282, %v2093
      %v2292 = vadd.f32 %v2283, %v2094
      %v2293 = vadd.f32 %v2284, %v2095
      %v2294 = vadd.f32 %v2285, %v2096
      %v2295 = vadd.f32 %v2286, %v2097
      %v2296 = vadd.f32 %v2287, %v2098
      %v2297 = vadd.f32 %v2288, %v2099
      %v2298 = vadd.f32 %v2289, %v2100
      %v2299 = vadd.f32 %v2290, %v2101
      %v2300 = vld [vmem:[%s5] sm:$0xff]
      %v2301 = vld [vmem:[%s5 + $0x8] sm:$0xff]
      %v2302 = vld [vmem:[%s5 + $0x10] sm:$0xff]
      %v2303 = vld [vmem:[%s5 + $0x18] sm:$0xff]
      %v2304 = vld [vmem:[%s5 + $0x20] sm:$0xff]
      %v2305 = vld [vmem:[%s5 + $0x28] sm:$0xff]
      %v2306 = vld [vmem:[%s5 + $0x30] sm:$0xff]
      %v2307 = vld [vmem:[%s5 + $0x38] sm:$0xff]
      %vm2308 = vcmask 523264
      %v2310 = vsel %vm2308, %v2291, 0
      %v2313 = vsel %vm2308, %v2292, 0
      %v2316 = vsel %vm2308, %v2293, 0
      %v2319 = vsel %vm2308, %v2294, 0
      %v2322 = vsel %vm2308, %v2295, 0
      %v2325 = vsel %vm2308, %v2296, 0
      %v2328 = vsel %vm2308, %v2297, 0
      %v2331 = vsel %vm2308, %v2298, 0
      %v2334 = vsel %vm2308, %v2299, 0
      %2336 = vmatpush.msra.mxu0 0.0
      %2337 = vmatpush.msra.mxu0 0.0
      %2338 = vmatpush.msra.mxu0 0.0
      %2339 = vmatpush.msra.mxu0 0.0
      %2340 = vmatpush.msra.mxu0 0.0
      %2341 = vmatpush.msra.mxu0 0.0
      %2342 = vmatpush.msra.mxu0 0.0
      %2343 = vmatpush.msra.mxu0 0.0
      %2344 = vmatpush.msra.mxu0 %v2307
      %2345 = vmatpush.msra.mxu0 %v2306
      %2346 = vmatpush.msra.mxu0 %v2305
      %2347 = vmatpush.msra.mxu0 %v2304
      %2348 = vmatpush.msra.mxu0 %v2303
      %2349 = vmatpush.msra.mxu0 %v2302
      %2350 = vmatpush.msra.mxu0 %v2301
      %2351 = vmatpush.msra.mxu0 %v2300
      %2352 = vmatmul.f32.gmra.mxu0 %v2310
      %v2353 = vpop.f32.mrf.mxu0
      %v2354 = vadd.f32 0.0, %v2353
      %2355 = vmatmul.f32.gmra.mxu0 %v2313
      %v2356 = vpop.f32.mrf.mxu0
      %v2357 = vadd.f32 0.0, %v2356
      %2358 = vmatmul.f32.gmra.mxu0 %v2316
      %v2359 = vpop.f32.mrf.mxu0
      %v2360 = vadd.f32 0.0, %v2359
      %2361 = vmatmul.f32.gmra.mxu0 %v2319
      %v2362 = vpop.f32.mrf.mxu0
      %v2363 = vadd.f32 0.0, %v2362
      %2364 = vmatmul.f32.gmra.mxu0 %v2322
      %v2365 = vpop.f32.mrf.mxu0
      %v2366 = vadd.f32 0.0, %v2365
      %2367 = vmatmul.f32.gmra.mxu0 %v2325
      %v2368 = vpop.f32.mrf.mxu0
      %v2369 = vadd.f32 0.0, %v2368
      %2370 = vmatmul.f32.gmra.mxu0 %v2328
      %v2371 = vpop.f32.mrf.mxu0
      %v2372 = vadd.f32 0.0, %v2371
      %2373 = vmatmul.f32.gmra.mxu0 %v2331
      %v2374 = vpop.f32.mrf.mxu0
      %v2375 = vadd.f32 0.0, %v2374
      %2376 = vmatmul.f32.gmra.mxu0 %v2334
      %v2377 = vpop.f32.mrf.mxu0
      %v2378 = vadd.f32 0.0, %v2377
      %2379 = vdwg.mxu0
      %v2380 = vsub.f32 %v2291, %v2354
      %v2381 = vsub.f32 %v2292, %v2357
      %v2382 = vsub.f32 %v2293, %v2360
      %v2383 = vsub.f32 %v2294, %v2363
      %v2384 = vsub.f32 %v2295, %v2366
      %v2385 = vsub.f32 %v2296, %v2369
      %v2386 = vsub.f32 %v2297, %v2372
      %v2387 = vsub.f32 %v2298, %v2375
      %v2388 = vsub.f32 %v2299, %v2378
      %v2389 = vmul.f32 %v2380, %v2380
      %v2390 = vmul.f32 %v2381, %v2381
      %v2391 = vmul.f32 %v2382, %v2382
      %v2392 = vmul.f32 %v2383, %v2383
      %v2393 = vmul.f32 %v2384, %v2384
      %v2394 = vmul.f32 %v2385, %v2385
      %v2395 = vmul.f32 %v2386, %v2386
      %v2396 = vmul.f32 %v2387, %v2387
      %v2397 = vmul.f32 %v2388, %v2388
      %v2399 = vsel %vm2308, %v2389, 0
      %v2402 = vsel %vm2308, %v2390, 0
      %v2405 = vsel %vm2308, %v2391, 0
      %v2408 = vsel %vm2308, %v2392, 0
      %v2411 = vsel %vm2308, %v2393, 0
      %v2414 = vsel %vm2308, %v2394, 0
      %v2417 = vsel %vm2308, %v2395, 0
      %v2420 = vsel %vm2308, %v2396, 0
      %v2423 = vsel %vm2308, %v2397, 0
      %2425 = vmatpush.msra.mxu0 0.0
      %2426 = vmatpush.msra.mxu0 0.0
      %2427 = vmatpush.msra.mxu0 0.0
      %2428 = vmatpush.msra.mxu0 0.0
      %2429 = vmatpush.msra.mxu0 0.0
      %2430 = vmatpush.msra.mxu0 0.0
      %2431 = vmatpush.msra.mxu0 0.0
      %2432 = vmatpush.msra.mxu0 0.0
      %2433 = vmatpush.msra.mxu0 %v2307
      %2434 = vmatpush.msra.mxu0 %v2306
      %2435 = vmatpush.msra.mxu0 %v2305
      %2436 = vmatpush.msra.mxu0 %v2304
      %2437 = vmatpush.msra.mxu0 %v2303
      %2438 = vmatpush.msra.mxu0 %v2302
      %2439 = vmatpush.msra.mxu0 %v2301
      %2440 = vmatpush.msra.mxu0 %v2300
      %2441 = vmatmul.f32.gmra.mxu0 %v2399
      %v2442 = vpop.f32.mrf.mxu0
      %v2443 = vadd.f32 1e-05, %v2442
      %2444 = vmatmul.f32.gmra.mxu0 %v2402
      %v2445 = vpop.f32.mrf.mxu0
      %v2446 = vadd.f32 1e-05, %v2445
      %2447 = vmatmul.f32.gmra.mxu0 %v2405
      %v2448 = vpop.f32.mrf.mxu0
      %v2449 = vadd.f32 1e-05, %v2448
      %2450 = vmatmul.f32.gmra.mxu0 %v2408
      %v2451 = vpop.f32.mrf.mxu0
      %v2452 = vadd.f32 1e-05, %v2451
      %2453 = vmatmul.f32.gmra.mxu0 %v2411
      %v2454 = vpop.f32.mrf.mxu0
      %v2455 = vadd.f32 1e-05, %v2454
      %2456 = vmatmul.f32.gmra.mxu0 %v2414
      %v2457 = vpop.f32.mrf.mxu0
      %v2458 = vadd.f32 1e-05, %v2457
      %2459 = vmatmul.f32.gmra.mxu0 %v2417
      %v2460 = vpop.f32.mrf.mxu0
      %v2461 = vadd.f32 1e-05, %v2460
      %2462 = vmatmul.f32.gmra.mxu0 %v2420
      %v2463 = vpop.f32.mrf.mxu0
      %v2464 = vadd.f32 1e-05, %v2463
      %2465 = vmatmul.f32.gmra.mxu0 %v2423
      %v2466 = vpop.f32.mrf.mxu0
      %v2467 = vadd.f32 1e-05, %v2466
      %2468 = vdwg.mxu0
      %v2469 = vrsqrt.pop %v2443
      %v2470 = vmul.f32 %v2469, %v2443
      %v2471 = vmul.f32 %v2470, %v2469
      %v2472 = vmul.f32 0.5, %v2471
      %v2473 = vsub.f32 1.5, %v2472
      %v2474 = vmul.f32 %v2469, %v2473
      %vm2475 = vweird.f32 %v2443
      %vm2476 = vweird.f32 %v2469
      %vm2477 = vmor %vm2475, %vm2476
      %v2478 = vsel %vm2477, %v2469, %v2474
      %v2479 = vrsqrt.pop %v2446
      %v2480 = vmul.f32 %v2479, %v2446
      %v2481 = vmul.f32 %v2480, %v2479
      %v2482 = vmul.f32 0.5, %v2481
      %v2483 = vsub.f32 1.5, %v2482
      %v2484 = vmul.f32 %v2479, %v2483
      %vm2485 = vweird.f32 %v2446
      %vm2486 = vweird.f32 %v2479
      %vm2487 = vmor %vm2485, %vm2486
      %v2488 = vsel %vm2487, %v2479, %v2484
      %v2489 = vrsqrt.pop %v2449
      %v2490 = vmul.f32 %v2489, %v2449
      %v2491 = vmul.f32 %v2490, %v2489
      %v2492 = vmul.f32 0.5, %v2491
      %v2493 = vsub.f32 1.5, %v2492
      %v2494 = vmul.f32 %v2489, %v2493
      %vm2495 = vweird.f32 %v2449
      %vm2496 = vweird.f32 %v2489
      %vm2497 = vmor %vm2495, %vm2496
      %v2498 = vsel %vm2497, %v2489, %v2494
      %v2499 = vrsqrt.pop %v2452
      %v2500 = vmul.f32 %v2499, %v2452
      %v2501 = vmul.f32 %v2500, %v2499
      %v2502 = vmul.f32 0.5, %v2501
      %v2503 = vsub.f32 1.5, %v2502
      %v2504 = vmul.f32 %v2499, %v2503
      %vm2505 = vweird.f32 %v2452
      %vm2506 = vweird.f32 %v2499
      %vm2507 = vmor %vm2505, %vm2506
      %v2508 = vsel %vm2507, %v2499, %v2504
      %v2509 = vrsqrt.pop %v2455
      %v2510 = vmul.f32 %v2509, %v2455
      %v2511 = vmul.f32 %v2510, %v2509
      %v2512 = vmul.f32 0.5, %v2511
      %v2513 = vsub.f32 1.5, %v2512
      %v2514 = vmul.f32 %v2509, %v2513
      %vm2515 = vweird.f32 %v2455
      %vm2516 = vweird.f32 %v2509
      %vm2517 = vmor %vm2515, %vm2516
      %v2518 = vsel %vm2517, %v2509, %v2514
      %v2519 = vrsqrt.pop %v2458
      %v2520 = vmul.f32 %v2519, %v2458
      %v2521 = vmul.f32 %v2520, %v2519
      %v2522 = vmul.f32 0.5, %v2521
      %v2523 = vsub.f32 1.5, %v2522
      %v2524 = vmul.f32 %v2519, %v2523
      %vm2525 = vweird.f32 %v2458
      %vm2526 = vweird.f32 %v2519
      %vm2527 = vmor %vm2525, %vm2526
      %v2528 = vsel %vm2527, %v2519, %v2524
      %v2529 = vrsqrt.pop %v2461
      %v2530 = vmul.f32 %v2529, %v2461
      %v2531 = vmul.f32 %v2530, %v2529
      %v2532 = vmul.f32 0.5, %v2531
      %v2533 = vsub.f32 1.5, %v2532
      %v2534 = vmul.f32 %v2529, %v2533
      %vm2535 = vweird.f32 %v2461
      %vm2536 = vweird.f32 %v2529
      %vm2537 = vmor %vm2535, %vm2536
      %v2538 = vsel %vm2537, %v2529, %v2534
      %v2539 = vrsqrt.pop %v2464
      %v2540 = vmul.f32 %v2539, %v2464
      %v2541 = vmul.f32 %v2540, %v2539
      %v2542 = vmul.f32 0.5, %v2541
      %v2543 = vsub.f32 1.5, %v2542
      %v2544 = vmul.f32 %v2539, %v2543
      %vm2545 = vweird.f32 %v2464
      %vm2546 = vweird.f32 %v2539
      %vm2547 = vmor %vm2545, %vm2546
      %v2548 = vsel %vm2547, %v2539, %v2544
      %v2549 = vrsqrt.pop %v2467
      %v2550 = vmul.f32 %v2549, %v2467
      %v2551 = vmul.f32 %v2550, %v2549
      %v2552 = vmul.f32 0.5, %v2551
      %v2553 = vsub.f32 1.5, %v2552
      %v2554 = vmul.f32 %v2549, %v2553
      %vm2555 = vweird.f32 %v2467
      %vm2556 = vweird.f32 %v2549
      %vm2557 = vmor %vm2555, %vm2556
      %v2558 = vsel %vm2557, %v2549, %v2554
      %v2559 = vmul.f32 %v2380, %v2478
      %v2560 = vmul.f32 %v2381, %v2488
      %v2561 = vmul.f32 %v2382, %v2498
      %v2562 = vmul.f32 %v2383, %v2508
      %v2563 = vmul.f32 %v2384, %v2518
      %v2564 = vmul.f32 %v2385, %v2528
      %v2565 = vmul.f32 %v2386, %v2538
      %v2566 = vmul.f32 %v2387, %v2548
      %v2567 = vmul.f32 %v2388, %v2558
      %v2568 = vld [vmem:[%s6] sm:$0x1]
      %v2570 = vperm.slane %v2568, 0
      %v2572 = vmul.f32 %v2559, %v2570
      %v2573 = vmul.f32 %v2560, %v2570
      %v2574 = vmul.f32 %v2561, %v2570
      %v2575 = vmul.f32 %v2562, %v2570
      %v2576 = vmul.f32 %v2563, %v2570
      %v2577 = vmul.f32 %v2564, %v2570
      %v2578 = vmul.f32 %v2565, %v2570
      %v2579 = vmul.f32 %v2566, %v2570
      %v2580 = vmul.f32 %v2567, %v2570
      %v2581 = vld [vmem:[%s7] sm:$0x1]
      %v2583 = vperm.slane %v2581, 0
      %v2585 = vadd.f32 %v2572, %v2583
      %v2586 = vadd.f32 %v2573, %v2583
      %v2587 = vadd.f32 %v2574, %v2583
      %v2588 = vadd.f32 %v2575, %v2583
      %v2589 = vadd.f32 %v2576, %v2583
      %v2590 = vadd.f32 %v2577, %v2583
      %v2591 = vadd.f32 %v2578, %v2583
      %v2592 = vadd.f32 %v2579, %v2583
      %v2593 = vadd.f32 %v2580, %v2583
      %2594 = vst.msk [vmem:[%s310] sm:$0xff] %vm2308, %v2585
      %2595 = vst.msk [vmem:[%s310 + $0x8] sm:$0xff] %vm2308, %v2586
      %2596 = vst.msk [vmem:[%s310 + $0x10] sm:$0xff] %vm2308, %v2587
      %2597 = vst.msk [vmem:[%s310 + $0x18] sm:$0xff] %vm2308, %v2588
      %2598 = vst.msk [vmem:[%s310 + $0x20] sm:$0xff] %vm2308, %v2589
      %2599 = vst.msk [vmem:[%s310 + $0x28] sm:$0xff] %vm2308, %v2590
      %2600 = vst.msk [vmem:[%s310 + $0x30] sm:$0xff] %vm2308, %v2591
      %2601 = vst.msk [vmem:[%s310 + $0x38] sm:$0xff] %vm2308, %v2592
      %2602 = vst.msk [vmem:[%s310 + $0x40] sm:$0xff] %vm2308, %v2593
      %p2603 = scmp.lt.s32.totalorder %s19, 1
      %s2604 = scalar_select %p2603, %s19, 1
      %s2605 = smul.addr %s2604, 9
      %s2606 = smul.addr %s2605, 8
      %s2607 = scalar_lea.vmem %s8, %s2606
      // Predicated region
      $region53: #{adapter_forward.1} parent=51 // pred_check
        %p2608 = pneg %p210
      $region54: #{adapter_forward.1} parent=51 // pred_check_branch
        %2610 = sbr.rel (%p2608) target = $region56
      $region55: #{adapter_forward.1} parent=51 // pred_region
        _
      $region56: #{adapter_forward.1} parent=51 // pred_fallthru
        _
    $region52: #{adapter_forward.1} parent=5 // pred_fallthru
      _
    %p2611 = scmp.le.s32.totalorder 2, %s14
    // Predicated region
    $region57: #{adapter_forward.1} parent=5 // pred_check
      %p2612 = pneg %p2611
    $region58: #{adapter_forward.1} parent=5 // pred_check_branch
      %2614 = sbr.rel (%p2612) target = $region60
    $region59: #{adapter_forward.1} parent=5 // pred_region
      %s2615 = ssub.s32 %s14, 2
      // Predicated region
      $region61: #{adapter_forward.1} parent=59 // pred_check
        %p2616 = pneg %p216
      $region62: #{adapter_forward.1} parent=59 // pred_check_branch
        %2618 = sbr.rel (%p2616) target = $region64
      $region63: #{adapter_forward.1} parent=59 // pred_region
        %p2619 = scmp.lt.s32.totalorder %s20, 1
        %s2620 = scalar_select %p2619, %s20, 1
        %s2621 = smul.addr %s2620, 9
        %s2622 = smul.addr %s2621, 8
        %s2623 = scalar_lea.vmem %s8, %s2622
      $region64: #{adapter_forward.1} parent=59 // pred_fallthru
        _
    $region60: #{adapter_forward.1} parent=5 // pred_fallthru
      _
  $region6: #{adapter_forward.1} parent=0 // loop_footer
    %s18 = sadd.s32 1, %s14
  $region7: #{adapter_forward.1} parent=0 // loop_footer_branch
    %13 = sbr.rel target = $region3
  $region8: #{adapter_forward.1} parent=0 // loop_exit
    _

</llo_original>
